<compile_context>
chip_gen: v6e
topology: v6e:2x2x1
jax: 0.10.0
libtpu: 0.0.40
codegen_flags: <defaults>
</compile_context>

<pallas_src>
import functools
import math

import numpy as np
import jax
import jax.numpy as jnp
from jax.experimental import pallas as pl
from jax.experimental.pallas import tpu as pltpu


# ----------------------------- config ---------------------------------------
class DinatConfig:
    kernel_size = 3
    mlp_ratio = 3.0
    hidden_act = "gelu"
    layer_norm_eps = 1e-5
    hidden_dropout_prob = 0.0
    attention_probs_dropout_prob = 0.0
    qkv_bias = True
    layer_scale_init_value = 1.0         # > 0 so the layer-scale branch is exercised
    chunk_size_feed_forward = 0


MASK_VALUE = -1e30


# -------------------- NATTEN neighborhood index helpers (one-time prep) ------
def _natten_starts(length, kernel_size, dilation):
    """Per-position neighborhood window start + rpb start (NATTEN semantics)."""
    k, ns = kernel_size, kernel_size // 2
    starts, pb_starts = [], []
    for idx in range(length):
        if dilation <= 1:
            start = max(idx - ns, 0) + (
                (length - idx - ns - 1) if idx + ns >= length else 0)
            pb = ns + ((ns - idx) if idx < ns else 0) + (
                (length - idx - 1 - ns) if idx + ns >= length else 0)
        else:
            if idx - ns * dilation < 0:
                start = idx % dilation
                pb = k - 1 - (idx // dilation)
            elif idx + ns * dilation >= length:
                imodd = idx % dilation
                a = (length // dilation) * dilation
                b = length - a
                if imodd < b:
                    start = length - b + imodd - 2 * ns * dilation
                else:
                    start = a + imodd - k * dilation
                pb = (length - idx - 1) // dilation
            else:
                start = idx - ns * dilation
                pb = ns
        starts.append(start)
        pb_starts.append(pb)
    return starts, pb_starts


def build_natten_bias(rpb, height, width, kernel_size, dilation):
    """Dense [heads, L, L] additive bias: rpb inside each query's dilated K x K
    neighborhood, MASK_VALUE outside. Computed ONCE at prepare time."""
    k = kernel_size
    num_heads = rpb.shape[0]
    ri, pi = _natten_starts(height, k, dilation)
    rj, pj = _natten_starts(width, k, dilation)
    L, kk = height * width, k * k
    key_idx = np.zeros((L, kk), np.int32)
    rpb_idx = np.zeros((L, kk), np.int32)
    for i in range(height):
        for j in range(width):
            q = i * width + j
            for ki in range(k):
                for kj in range(k):
                    key_idx[q, ki * k + kj] = (
                        (ri[i] + ki * dilation) * width + (rj[j] + kj * dilation))
                    rpb_idx[q, ki * k + kj] = (pi[i] + ki) * (2 * k - 1) + (pj[j] + kj)
    vals = rpb.reshape(num_heads, (2 * k - 1) ** 2)[:, rpb_idx]       # [nH, L, K*K]
    bias = jnp.full((num_heads, L, L), MASK_VALUE, dtype=jnp.float32)
    rows = np.arange(L)[:, None]
    return bias.at[:, rows, key_idx].set(vals)


# ----------------------------- in-kernel math --------------------------------
def _gelu_tanh(x):
    # tanh-approx GELU (tanh lowers to the EUP; within test tolerance of exact).
    c = math.sqrt(2.0 / math.pi)
    return 0.5 * x * (1.0 + jnp.tanh(c * (x + 0.044715 * x * x * x)))


def _layernorm(x, gamma, beta, eps):
    mean = jnp.mean(x, axis=-1, keepdims=True)
    xc = x - mean
    var = jnp.mean(xc * xc, axis=-1, keepdims=True)
    return xc * jax.lax.rsqrt(var + eps) * gamma + beta


# ------------------------------- fused kernel --------------------------------
def dinat_layer_kernel(x_ref, mask_ref, ln1g_ref, ln1b_ref, wqkv_ref, bqkv_ref,
                       bias_ref, wo_ref, bo_ref, ls0_ref, ls1_ref,
                       ln2g_ref, ln2b_ref, w1_ref, b1_ref, w2_ref, b2_ref,
                       o_ref, ctx_ref, *, num_heads, head_dim, eps):
    x = x_ref[...]                                                    # [Lp, C] f32

    # layernorm_before; zero padded rows (== HF pads zeros AFTER layernorm).
    ln1 = _layernorm(x, ln1g_ref[...], ln1b_ref[...], eps) * mask_ref[...]

    # fused QKV projection (1/sqrt(head_dim) already folded into wq/bq).
    C = num_heads * head_dim
    qkv = jnp.dot(ln1.astype(jnp.bfloat16), wqkv_ref[...],
                  preferred_element_type=jnp.float32) + bqkv_ref[...]  # [Lp, 3C]
    q = qkv[:, :C].astype(jnp.bfloat16)
    k = qkv[:, C:2 * C].astype(jnp.bfloat16)
    v = qkv[:, 2 * C:].astype(jnp.bfloat16)

    # dilated neighborhood attention via dense bias (rpb in-window, -1e30 out).
    for h in range(num_heads):                                        # static unroll
        sl = slice(h * head_dim, (h + 1) * head_dim)
        s = jax.lax.dot_general(q[:, sl], k[:, sl], (((1,), (1,)), ((), ())),
                                preferred_element_type=jnp.float32)   # [Lp, Lp]
        s = s + bias_ref[h]
        s = s - jnp.max(s, axis=-1, keepdims=True)
        p = jnp.exp(s)
        p = p * pl.reciprocal(jnp.sum(p, axis=-1, keepdims=True), approx=True)
        ctx_ref[:, sl] = jnp.dot(p.astype(jnp.bfloat16), v[:, sl],
                                 preferred_element_type=jnp.float32)  # [Lp, hd]

    # single output projection over all heads.
    attn = jnp.dot(ctx_ref[...].astype(jnp.bfloat16), wo_ref[...],
                   preferred_element_type=jnp.float32) + bo_ref[...]

    # residual + layer_scale[0]
    h1 = x + ls0_ref[...] * attn

    # layernorm_after + MLP (GELU) + layer_scale[1] + residual
    y = _layernorm(h1, ln2g_ref[...], ln2b_ref[...], eps).astype(jnp.bfloat16)
    inter = jnp.dot(y, w1_ref[...], preferred_element_type=jnp.float32) + b1_ref[...]
    inter = _gelu_tanh(inter).astype(jnp.bfloat16)
    mlp = jnp.dot(inter, w2_ref[...], preferred_element_type=jnp.float32) + b2_ref[...]
    o_ref[...] = h1 + ls1_ref[...] * mlp


# --------------------------- one-time parameter prep --------------------------
def prepare_layer(params, config, dim, num_heads, dilation, height, width):
    """Host-side, once per (layer, geometry): fuse/scale/cast weights, build the
    neighborhood bias and the valid-row mask."""
    k = config.kernel_size
    window = k * dilation
    head_dim = dim // num_heads
    pad_b, pad_r = max(0, window - height), max(0, window - width)
    Hp, Wp = height + pad_b, width + pad_r
    Lp = Hp * Wp

    scale = 1.0 / math.sqrt(head_dim)
    wqkv = jnp.concatenate([params["wq"] * scale, params["wk"], params["wv"]], axis=1)
    bqkv = jnp.concatenate([params["bq"] * scale, params["bk"], params["bv"]], axis=1)

    if config.layer_scale_init_value > 0:
        ls0, ls1 = params["ls"][0:1], params["ls"][1:2]
    else:
        ls0 = ls1 = jnp.ones((1, dim), jnp.float32)

    bias = build_natten_bias(params["rpb"], Hp, Wp, k, dilation)      # [nH, Lp, Lp]
    valid = (np.arange(Hp)[:, None] < height) & (np.arange(Wp)[None, :] < width)
    mask = jnp.asarray(valid.reshape(Lp, 1).astype(np.float32))

    return dict(
        height=height, width=width, Hp=Hp, Wp=Wp,
        num_heads=num_heads, head_dim=head_dim, eps=config.layer_norm_eps,
        mask=mask, bias=bias,
        ln1_g=params["ln1_g"], ln1_b=params["ln1_b"],
        ln2_g=params["ln2_g"], ln2_b=params["ln2_b"],
        wqkv=wqkv.astype(jnp.bfloat16), bqkv=bqkv,
        wo=params["wo"].astype(jnp.bfloat16), bo=params["bo"],
        w1=params["w1"].astype(jnp.bfloat16), b1=params["b1"],
        w2=params["w2"].astype(jnp.bfloat16), b2=params["b2"],
        ls0=ls0, ls1=ls1,
    )


# ---------------------------- full DinatLayer forward -------------------------
def dinat_layer_forward(x, prep):
    B, H, W, C = x.shape
    Hp, Wp = prep["Hp"], prep["Wp"]
    Lp = Hp * Wp
    nH = prep["num_heads"]
    Ci = prep["w1"].shape[1]

    pad_b, pad_r = Hp - H, Wp - W
    xp = x
    if pad_b or pad_r:
        xp = jnp.pad(x, ((0, 0), (0, pad_b), (0, pad_r), (0, 0)))
    xp = xp.reshape(B, Lp, C)

    def bspec(shape):
        n = len(shape)
        return pl.BlockSpec(shape, lambda b, _n=n: (0,) * _n)

    out = pl.pallas_call(
        functools.partial(dinat_layer_kernel, num_heads=nH,
                          head_dim=prep["head_dim"], eps=prep["eps"]),
        out_shape=jax.ShapeDtypeStruct((B, Lp, C), jnp.float32),
        grid=(B,),
        in_specs=[pl.BlockSpec((None, Lp, C), lambda b: (b, 0, 0)),   # x (padded)
                  bspec((Lp, 1)),                                     # valid mask
                  bspec((1, C)), bspec((1, C)),                       # ln1 g/b
                  bspec((C, 3 * C)), bspec((1, 3 * C)),               # wqkv / bqkv
                  bspec((nH, Lp, Lp)),                                # natten bias
                  bspec((C, C)), bspec((1, C)),                       # wo / bo
                  bspec((1, C)), bspec((1, C)),                       # ls0 / ls1
                  bspec((1, C)), bspec((1, C)),                       # ln2 g/b
                  bspec((C, Ci)), bspec((1, Ci)),                     # w1 / b1
                  bspec((Ci, C)), bspec((1, C))],                     # w2 / b2
        out_specs=pl.BlockSpec((None, Lp, C), lambda b: (b, 0, 0)),
        scratch_shapes=[pltpu.VMEM((Lp, C), jnp.float32)],            # ctx scratch
        compiler_params=pltpu.CompilerParams(dimension_semantics=("parallel",)),
    )(xp, prep["mask"], prep["ln1_g"], prep["ln1_b"], prep["wqkv"], prep["bqkv"],
      prep["bias"], prep["wo"], prep["bo"], prep["ls0"], prep["ls1"],
      prep["ln2_g"], prep["ln2_b"], prep["w1"], prep["b1"], prep["w2"], prep["b2"])

    return out.reshape(B, Hp, Wp, C)[:, :H, :W, :]


# ------------------------------ parameters ------------------------------------
def init_params(key, dim, num_heads, kernel_size, mlp_ratio, layer_scale_init_value):
    hidden = int(mlp_ratio * dim)
    ks = jax.random.split(key, 8)

    def dense(kk, din, dout):
        kw, kb = jax.random.split(kk)
        return (jax.random.normal(kw, (din, dout), jnp.float32) * 0.02,
                jax.random.normal(kb, (1, dout), jnp.float32) * 0.02)

    wq, bq = dense(ks[0], dim, dim)
    wk, bk = dense(ks[1], dim, dim)
    wv, bv = dense(ks[2], dim, dim)
    wo, bo = dense(ks[3], dim, dim)
    w1, b1 = dense(ks[4], dim, hidden)
    w2, b2 = dense(ks[5], hidden, dim)
    rpb = jax.random.normal(
        ks[6], (num_heads, 2 * kernel_size - 1, 2 * kernel_size - 1), jnp.float32) * 0.02
    return dict(
        ln1_g=jnp.ones((1, dim), jnp.float32), ln1_b=jnp.zeros((1, dim), jnp.float32),
        ln2_g=jnp.ones((1, dim), jnp.float32), ln2_b=jnp.zeros((1, dim), jnp.float32),
        wq=wq, bq=bq, wk=wk, bk=bk, wv=wv, bv=bv, wo=wo, bo=bo,
        w1=w1, b1=b1, w2=w2, b2=b2, rpb=rpb,
        ls=layer_scale_init_value * jnp.ones((2, dim), jnp.float32),
    )


# ------------------------- pure-JAX reference (check) --------------------------
def reference_forward(x, params, config, num_heads, dilation):
    B, H, W, C = x.shape
    k = config.kernel_size
    window = k * dilation
    hd = C // num_heads
    eps = config.layer_norm_eps

    def ln(v, g, b):
        mu = jnp.mean(v, axis=-1, keepdims=True)
        var = jnp.mean((v - mu) ** 2, axis=-1, keepdims=True)
        return (v - mu) / jnp.sqrt(var + eps) * g[0] + b[0]

    shortcut = x
    h = ln(x, params["ln1_g"], params["ln1_b"])
    pad_b, pad_r = max(0, window - H), max(0, window - W)
    if pad_b or pad_r:
        h = jnp.pad(h, ((0, 0), (0, pad_b), (0, pad_r), (0, 0)))
    Hp, Wp = H + pad_b, W + pad_r
    Lp = Hp * Wp
    hf = h.reshape(B, Lp, C)
    q = (hf @ params["wq"] + params["bq"]).reshape(B, Lp, num_heads, hd)
    kk = (hf @ params["wk"] + params["bk"]).reshape(B, Lp, num_heads, hd)
    v = (hf @ params["wv"] + params["bv"]).reshape(B, Lp, num_heads, hd)
    bias = build_natten_bias(params["rpb"], Hp, Wp, k, dilation)
    s = jnp.einsum("bqhd,bkhd->bhqk", q / math.sqrt(hd), kk) + bias[None]
    p = jax.nn.softmax(s, axis=-1)
    ctx = jnp.einsum("bhqk,bkhd->bqhd", p, v).reshape(B, Lp, C)
    attn = (ctx @ params["wo"] + params["bo"]).reshape(B, Hp, Wp, C)[:, :H, :W, :]
    if config.layer_scale_init_value > 0:
        attn = params["ls"][0] * attn
    hidden = shortcut + attn
    y = ln(hidden, params["ln2_g"], params["ln2_b"])
    y = jax.nn.gelu(y @ params["w1"] + params["b1"], approximate=False)
    y = y @ params["w2"] + params["b2"]
    if config.layer_scale_init_value > 0:
        y = params["ls"][1] * y
    return hidden + y


# ----------------------------------- main ---------------------------------------
if __name__ == "__main__":
    config = DinatConfig()
    # (batch, H, W, dim, num_heads, dilation)
    #   case 1: window = 3*2 = 6 <= 8  -> no padding
    #   case 2: window = 6 > 5         -> maybe_pad path exercised
    cases = [(2, 8, 8, 32, 2, 2),
             (2, 5, 5, 32, 2, 2)]

    key = jax.random.PRNGKey(0)
    for (batch, height, width, dim, num_heads, dilation) in cases:
        key, k_x, k_p = jax.random.split(key, 3)
        x = jax.random.normal(k_x, (batch, height, width, dim), jnp.float32)
        params = init_params(k_p, dim, num_heads, config.kernel_size,
                             config.mlp_ratio, config.layer_scale_init_value)
        prep = prepare_layer(params, config, dim, num_heads, dilation, height, width)

        out = dinat_layer_forward(x, prep)
        out = jax.block_until_ready(out)

        ref = reference_forward(x, params, config, num_heads, dilation)
        assert out.shape == (batch, height, width, dim)
        np.testing.assert_allclose(np.asarray(out), np.asarray(ref),
                                   rtol=2e-2, atol=5e-3)

    print("KERNEL_OK")
</pallas_src>

<mosaic_0001>
module attributes {stable_mosaic.version = 11 : i64} {
  func.func @dinat_layer_kernel(%arg0: i32, %arg1: memref<1x64x32xf32, #tpu.memory_space<vmem>>, %arg2: memref<64x1xf32, #tpu.memory_space<vmem>>, %arg3: memref<1x32xf32, #tpu.memory_space<vmem>>, %arg4: memref<1x32xf32, #tpu.memory_space<vmem>>, %arg5: memref<32x96xbf16, #tpu.memory_space<vmem>>, %arg6: memref<1x96xf32, #tpu.memory_space<vmem>>, %arg7: memref<2x64x64xf32, #tpu.memory_space<vmem>>, %arg8: memref<32x32xbf16, #tpu.memory_space<vmem>>, %arg9: memref<1x32xf32, #tpu.memory_space<vmem>>, %arg10: memref<1x32xf32, #tpu.memory_space<vmem>>, %arg11: memref<1x32xf32, #tpu.memory_space<vmem>>, %arg12: memref<1x32xf32, #tpu.memory_space<vmem>>, %arg13: memref<1x32xf32, #tpu.memory_space<vmem>>, %arg14: memref<32x96xbf16, #tpu.memory_space<vmem>>, %arg15: memref<1x96xf32, #tpu.memory_space<vmem>>, %arg16: memref<96x32xbf16, #tpu.memory_space<vmem>>, %arg17: memref<1x32xf32, #tpu.memory_space<vmem>>, %arg18: memref<1x64x32xf32, #tpu.memory_space<vmem>>, %arg19: memref<64x32xf32, #tpu.memory_space<vmem>>) attributes {dimension_semantics = [#tpu.dimension_semantics<parallel>], iteration_bounds = array<i64: 2>, scalar_prefetch = 0 : i64, scratch_operands = 1 : i64, tpu.core_type = #tpu.core_type<tc>, window_params = [{transform_indices = @transform_0, window_bounds = array<i64: 1, 64, 32>}, {pipeline_mode = #tpu.pipeline_mode<synchronous>, transform_indices = @transform_1, window_bounds = array<i64: 64, 1>}, {pipeline_mode = #tpu.pipeline_mode<synchronous>, transform_indices = @transform_2, window_bounds = array<i64: 1, 32>}, {pipeline_mode = #tpu.pipeline_mode<synchronous>, transform_indices = @transform_3, window_bounds = array<i64: 1, 32>}, {pipeline_mode = #tpu.pipeline_mode<synchronous>, transform_indices = @transform_4, window_bounds = array<i64: 32, 96>}, {pipeline_mode = #tpu.pipeline_mode<synchronous>, transform_indices = @transform_5, window_bounds = array<i64: 1, 96>}, {pipeline_mode = #tpu.pipeline_mode<synchronous>, transform_indices = @transform_6, window_bounds = array<i64: 2, 64, 64>}, {pipeline_mode = #tpu.pipeline_mode<synchronous>, transform_indices = @transform_7, window_bounds = array<i64: 32, 32>}, {pipeline_mode = #tpu.pipeline_mode<synchronous>, transform_indices = @transform_8, window_bounds = array<i64: 1, 32>}, {pipeline_mode = #tpu.pipeline_mode<synchronous>, transform_indices = @transform_9, window_bounds = array<i64: 1, 32>}, {pipeline_mode = #tpu.pipeline_mode<synchronous>, transform_indices = @transform_10, window_bounds = array<i64: 1, 32>}, {pipeline_mode = #tpu.pipeline_mode<synchronous>, transform_indices = @transform_11, window_bounds = array<i64: 1, 32>}, {pipeline_mode = #tpu.pipeline_mode<synchronous>, transform_indices = @transform_12, window_bounds = array<i64: 1, 32>}, {pipeline_mode = #tpu.pipeline_mode<synchronous>, transform_indices = @transform_13, window_bounds = array<i64: 32, 96>}, {pipeline_mode = #tpu.pipeline_mode<synchronous>, transform_indices = @transform_14, window_bounds = array<i64: 1, 96>}, {pipeline_mode = #tpu.pipeline_mode<synchronous>, transform_indices = @transform_15, window_bounds = array<i64: 96, 32>}, {pipeline_mode = #tpu.pipeline_mode<synchronous>, transform_indices = @transform_16, window_bounds = array<i64: 1, 32>}, {transform_indices = @transform_17, window_bounds = array<i64: 1, 64, 32>}]} {
    %c0 = arith.constant 0 : index
    %c0_0 = arith.constant 0 : index
    %c0_1 = arith.constant 0 : index
    %0 = vector.load %arg1[%c0, %c0_0, %c0_1] : memref<1x64x32xf32, #tpu.memory_space<vmem>>, vector<1x64x32xf32>
    %1 = vector.shape_cast %0 : vector<1x64x32xf32> to vector<64x32xf32>
    %c0_2 = arith.constant 0 : index
    %c0_3 = arith.constant 0 : index
    %2 = vector.load %arg3[%c0_2, %c0_3] : memref<1x32xf32, #tpu.memory_space<vmem>>, vector<1x32xf32>
    %c0_4 = arith.constant 0 : index
    %c0_5 = arith.constant 0 : index
    %3 = vector.load %arg4[%c0_4, %c0_5] : memref<1x32xf32, #tpu.memory_space<vmem>>, vector<1x32xf32>
    %cst = arith.constant dense<0.000000e+00> : vector<64xf32>
    %4 = vector.multi_reduction <add>, %1, %cst [1] : vector<64x32xf32> to vector<64xf32>
    %5 = vector.shape_cast %4 : vector<64xf32> to vector<64x1xf32>
    %cst_6 = arith.constant 3.200000e+01 : f32
    %6 = vector.broadcast %cst_6 : f32 to vector<64x1xf32>
    %7 = arith.divf %5, %6 : vector<64x1xf32>
    %8 = vector.broadcast %7 : vector<64x1xf32> to vector<64x32xf32>
    %9 = arith.subf %1, %8 : vector<64x32xf32>
    %10 = arith.mulf %9, %9 : vector<64x32xf32>
    %cst_7 = arith.constant dense<0.000000e+00> : vector<64xf32>
    %11 = vector.multi_reduction <add>, %10, %cst_7 [1] : vector<64x32xf32> to vector<64xf32>
    %12 = vector.shape_cast %11 : vector<64xf32> to vector<64x1xf32>
    %cst_8 = arith.constant 3.200000e+01 : f32
    %13 = vector.broadcast %cst_8 : f32 to vector<64x1xf32>
    %14 = arith.divf %12, %13 : vector<64x1xf32>
    %cst_9 = arith.constant 9.99999974E-6 : f32
    %15 = vector.broadcast %cst_9 : f32 to vector<64x1xf32>
    %16 = arith.addf %14, %15 : vector<64x1xf32>
    %17 = math.rsqrt %16 : vector<64x1xf32>
    %18 = vector.broadcast %17 : vector<64x1xf32> to vector<64x32xf32>
    %19 = arith.mulf %9, %18 : vector<64x32xf32>
    %20 = vector.broadcast %2 : vector<1x32xf32> to vector<64x32xf32>
    %21 = arith.mulf %19, %20 : vector<64x32xf32>
    %22 = vector.broadcast %3 : vector<1x32xf32> to vector<64x32xf32>
    %23 = arith.addf %21, %22 : vector<64x32xf32>
    %c0_10 = arith.constant 0 : index
    %c0_11 = arith.constant 0 : index
    %24 = vector.load %arg2[%c0_10, %c0_11] : memref<64x1xf32, #tpu.memory_space<vmem>>, vector<64x1xf32>
    %25 = vector.broadcast %24 : vector<64x1xf32> to vector<64x32xf32>
    %26 = arith.mulf %23, %25 : vector<64x32xf32>
    %27 = arith.truncf %26 : vector<64x32xf32> to vector<64x32xbf16>
    %c0_12 = arith.constant 0 : index
    %c0_13 = arith.constant 0 : index
    %28 = vector.load %arg5[%c0_12, %c0_13] : memref<32x96xbf16, #tpu.memory_space<vmem>>, vector<32x96xbf16>
    %cst_14 = arith.constant dense<0.000000e+00> : vector<64x96xf32>
    %29 = tpu.matmul %27, %28, %cst_14 {dimension_numbers = #tpu.dot_dimension_numbers<[1], [0], [0], [1], [0, 0, 1, 1], [], []>} : vector<64x32xbf16>, vector<32x96xbf16>, vector<64x96xf32> -> vector<64x96xf32>
    %c0_15 = arith.constant 0 : index
    %c0_16 = arith.constant 0 : index
    %30 = vector.load %arg6[%c0_15, %c0_16] : memref<1x96xf32, #tpu.memory_space<vmem>>, vector<1x96xf32>
    %31 = vector.broadcast %30 : vector<1x96xf32> to vector<64x96xf32>
    %32 = arith.addf %29, %31 : vector<64x96xf32>
    %33 = vector.extract_strided_slice %32 {offsets = [0, 0], sizes = [64, 32], strides = [1, 1]} : vector<64x96xf32> to vector<64x32xf32>
    %34 = arith.truncf %33 : vector<64x32xf32> to vector<64x32xbf16>
    %35 = vector.extract_strided_slice %32 {offsets = [0, 32], sizes = [64, 32], strides = [1, 1]} : vector<64x96xf32> to vector<64x32xf32>
    %36 = arith.truncf %35 : vector<64x32xf32> to vector<64x32xbf16>
    %37 = vector.extract_strided_slice %32 {offsets = [0, 64], sizes = [64, 32], strides = [1, 1]} : vector<64x96xf32> to vector<64x32xf32>
    %38 = arith.truncf %37 : vector<64x32xf32> to vector<64x32xbf16>
    %39 = vector.extract_strided_slice %34 {offsets = [0, 0], sizes = [64, 16], strides = [1, 1]} : vector<64x32xbf16> to vector<64x16xbf16>
    %40 = vector.extract_strided_slice %36 {offsets = [0, 0], sizes = [64, 16], strides = [1, 1]} : vector<64x32xbf16> to vector<64x16xbf16>
    %cst_17 = arith.constant dense<0.000000e+00> : vector<64x64xf32>
    %41 = tpu.matmul %39, %40, %cst_17 {dimension_numbers = #tpu.dot_dimension_numbers<[1], [1], [0], [0], [0, 0, 1, 0], [], []>} : vector<64x16xbf16>, vector<64x16xbf16>, vector<64x64xf32> -> vector<64x64xf32>
    %c0_18 = arith.constant 0 : index
    %c0_19 = arith.constant 0 : index
    %c0_20 = arith.constant 0 : index
    %42 = vector.load %arg7[%c0_18, %c0_19, %c0_20] : memref<2x64x64xf32, #tpu.memory_space<vmem>>, vector<1x64x64xf32>
    %43 = vector.shape_cast %42 : vector<1x64x64xf32> to vector<64x64xf32>
    %44 = arith.addf %41, %43 : vector<64x64xf32>
    %cst_21 = arith.constant dense<0xFF800000> : vector<64xf32>
    %45 = vector.multi_reduction <maximumf>, %44, %cst_21 [1] : vector<64x64xf32> to vector<64xf32>
    %46 = vector.shape_cast %45 : vector<64xf32> to vector<64x1xf32>
    %47 = vector.broadcast %46 : vector<64x1xf32> to vector<64x64xf32>
    %48 = arith.subf %44, %47 : vector<64x64xf32>
    %49 = math.exp %48 : vector<64x64xf32>
    %cst_22 = arith.constant dense<0.000000e+00> : vector<64xf32>
    %50 = vector.multi_reduction <add>, %49, %cst_22 [1] : vector<64x64xf32> to vector<64xf32>
    %51 = vector.shape_cast %50 : vector<64xf32> to vector<64x1xf32>
    %52 = tpu.reciprocal %51 {approx = true} : vector<64x1xf32> -> vector<64x1xf32>
    %53 = vector.broadcast %52 : vector<64x1xf32> to vector<64x64xf32>
    %54 = arith.mulf %49, %53 : vector<64x64xf32>
    %55 = arith.truncf %54 : vector<64x64xf32> to vector<64x64xbf16>
    %56 = vector.extract_strided_slice %38 {offsets = [0, 0], sizes = [64, 16], strides = [1, 1]} : vector<64x32xbf16> to vector<64x16xbf16>
    %cst_23 = arith.constant dense<0.000000e+00> : vector<64x16xf32>
    %57 = tpu.matmul %55, %56, %cst_23 {dimension_numbers = #tpu.dot_dimension_numbers<[1], [0], [0], [1], [0, 0, 1, 1], [], []>} : vector<64x64xbf16>, vector<64x16xbf16>, vector<64x16xf32> -> vector<64x16xf32>
    %c0_24 = arith.constant 0 : index
    %c0_25 = arith.constant 0 : index
    %58 = vector.load %arg19[%c0_24, %c0_25] : memref<64x32xf32, #tpu.memory_space<vmem>>, vector<64x16xf32>
    tpu.vector_store %arg19[%c0_24, %c0_25], %57 {strides = array<i32>} : memref<64x32xf32, #tpu.memory_space<vmem>>, vector<64x16xf32>,
    %59 = vector.extract_strided_slice %34 {offsets = [0, 16], sizes = [64, 16], strides = [1, 1]} : vector<64x32xbf16> to vector<64x16xbf16>
    %60 = vector.extract_strided_slice %36 {offsets = [0, 16], sizes = [64, 16], strides = [1, 1]} : vector<64x32xbf16> to vector<64x16xbf16>
    %cst_26 = arith.constant dense<0.000000e+00> : vector<64x64xf32>
    %61 = tpu.matmul %59, %60, %cst_26 {dimension_numbers = #tpu.dot_dimension_numbers<[1], [1], [0], [0], [0, 0, 1, 0], [], []>} : vector<64x16xbf16>, vector<64x16xbf16>, vector<64x64xf32> -> vector<64x64xf32>
    %c1 = arith.constant 1 : index
    %c0_27 = arith.constant 0 : index
    %c0_28 = arith.constant 0 : index
    %62 = vector.load %arg7[%c1, %c0_27, %c0_28] : memref<2x64x64xf32, #tpu.memory_space<vmem>>, vector<1x64x64xf32>
    %63 = vector.shape_cast %62 : vector<1x64x64xf32> to vector<64x64xf32>
    %64 = arith.addf %61, %63 : vector<64x64xf32>
    %cst_29 = arith.constant dense<0xFF800000> : vector<64xf32>
    %65 = vector.multi_reduction <maximumf>, %64, %cst_29 [1] : vector<64x64xf32> to vector<64xf32>
    %66 = vector.shape_cast %65 : vector<64xf32> to vector<64x1xf32>
    %67 = vector.broadcast %66 : vector<64x1xf32> to vector<64x64xf32>
    %68 = arith.subf %64, %67 : vector<64x64xf32>
    %69 = math.exp %68 : vector<64x64xf32>
    %cst_30 = arith.constant dense<0.000000e+00> : vector<64xf32>
    %70 = vector.multi_reduction <add>, %69, %cst_30 [1] : vector<64x64xf32> to vector<64xf32>
    %71 = vector.shape_cast %70 : vector<64xf32> to vector<64x1xf32>
    %72 = tpu.reciprocal %71 {approx = true} : vector<64x1xf32> -> vector<64x1xf32>
    %73 = vector.broadcast %72 : vector<64x1xf32> to vector<64x64xf32>
    %74 = arith.mulf %69, %73 : vector<64x64xf32>
    %75 = arith.truncf %74 : vector<64x64xf32> to vector<64x64xbf16>
    %76 = vector.extract_strided_slice %38 {offsets = [0, 16], sizes = [64, 16], strides = [1, 1]} : vector<64x32xbf16> to vector<64x16xbf16>
    %cst_31 = arith.constant dense<0.000000e+00> : vector<64x16xf32>
    %77 = tpu.matmul %75, %76, %cst_31 {dimension_numbers = #tpu.dot_dimension_numbers<[1], [0], [0], [1], [0, 0, 1, 1], [], []>} : vector<64x64xbf16>, vector<64x16xbf16>, vector<64x16xf32> -> vector<64x16xf32>
    %c0_32 = arith.constant 0 : index
    %c16 = arith.constant 16 : index
    %78 = vector.load %arg19[%c0_32, %c16] : memref<64x32xf32, #tpu.memory_space<vmem>>, vector<64x16xf32>
    tpu.vector_store %arg19[%c0_32, %c16], %77 {strides = array<i32>} : memref<64x32xf32, #tpu.memory_space<vmem>>, vector<64x16xf32>,
    %c0_33 = arith.constant 0 : index
    %c0_34 = arith.constant 0 : index
    %79 = vector.load %arg19[%c0_33, %c0_34] : memref<64x32xf32, #tpu.memory_space<vmem>>, vector<64x32xf32>
    %80 = arith.truncf %79 : vector<64x32xf32> to vector<64x32xbf16>
    %c0_35 = arith.constant 0 : index
    %c0_36 = arith.constant 0 : index
    %81 = vector.load %arg8[%c0_35, %c0_36] : memref<32x32xbf16, #tpu.memory_space<vmem>>, vector<32x32xbf16>
    %cst_37 = arith.constant dense<0.000000e+00> : vector<64x32xf32>
    %82 = tpu.matmul %80, %81, %cst_37 {dimension_numbers = #tpu.dot_dimension_numbers<[1], [0], [0], [1], [0, 0, 1, 1], [], []>} : vector<64x32xbf16>, vector<32x32xbf16>, vector<64x32xf32> -> vector<64x32xf32>
    %c0_38 = arith.constant 0 : index
    %c0_39 = arith.constant 0 : index
    %83 = vector.load %arg9[%c0_38, %c0_39] : memref<1x32xf32, #tpu.memory_space<vmem>>, vector<1x32xf32>
    %84 = vector.broadcast %83 : vector<1x32xf32> to vector<64x32xf32>
    %85 = arith.addf %82, %84 : vector<64x32xf32>
    %c0_40 = arith.constant 0 : index
    %c0_41 = arith.constant 0 : index
    %86 = vector.load %arg10[%c0_40, %c0_41] : memref<1x32xf32, #tpu.memory_space<vmem>>, vector<1x32xf32>
    %87 = vector.broadcast %86 : vector<1x32xf32> to vector<64x32xf32>
    %88 = arith.mulf %87, %85 : vector<64x32xf32>
    %89 = arith.addf %1, %88 : vector<64x32xf32>
    %c0_42 = arith.constant 0 : index
    %c0_43 = arith.constant 0 : index
    %90 = vector.load %arg12[%c0_42, %c0_43] : memref<1x32xf32, #tpu.memory_space<vmem>>, vector<1x32xf32>
    %c0_44 = arith.constant 0 : index
    %c0_45 = arith.constant 0 : index
    %91 = vector.load %arg13[%c0_44, %c0_45] : memref<1x32xf32, #tpu.memory_space<vmem>>, vector<1x32xf32>
    %cst_46 = arith.constant dense<0.000000e+00> : vector<64xf32>
    %92 = vector.multi_reduction <add>, %89, %cst_46 [1] : vector<64x32xf32> to vector<64xf32>
    %93 = vector.shape_cast %92 : vector<64xf32> to vector<64x1xf32>
    %cst_47 = arith.constant 3.200000e+01 : f32
    %94 = vector.broadcast %cst_47 : f32 to vector<64x1xf32>
    %95 = arith.divf %93, %94 : vector<64x1xf32>
    %96 = vector.broadcast %95 : vector<64x1xf32> to vector<64x32xf32>
    %97 = arith.subf %89, %96 : vector<64x32xf32>
    %98 = arith.mulf %97, %97 : vector<64x32xf32>
    %cst_48 = arith.constant dense<0.000000e+00> : vector<64xf32>
    %99 = vector.multi_reduction <add>, %98, %cst_48 [1] : vector<64x32xf32> to vector<64xf32>
    %100 = vector.shape_cast %99 : vector<64xf32> to vector<64x1xf32>
    %cst_49 = arith.constant 3.200000e+01 : f32
    %101 = vector.broadcast %cst_49 : f32 to vector<64x1xf32>
    %102 = arith.divf %100, %101 : vector<64x1xf32>
    %cst_50 = arith.constant 9.99999974E-6 : f32
    %103 = vector.broadcast %cst_50 : f32 to vector<64x1xf32>
    %104 = arith.addf %102, %103 : vector<64x1xf32>
    %105 = math.rsqrt %104 : vector<64x1xf32>
    %106 = vector.broadcast %105 : vector<64x1xf32> to vector<64x32xf32>
    %107 = arith.mulf %97, %106 : vector<64x32xf32>
    %108 = vector.broadcast %90 : vector<1x32xf32> to vector<64x32xf32>
    %109 = arith.mulf %107, %108 : vector<64x32xf32>
    %110 = vector.broadcast %91 : vector<1x32xf32> to vector<64x32xf32>
    %111 = arith.addf %109, %110 : vector<64x32xf32>
    %112 = arith.truncf %111 : vector<64x32xf32> to vector<64x32xbf16>
    %c0_51 = arith.constant 0 : index
    %c0_52 = arith.constant 0 : index
    %113 = vector.load %arg14[%c0_51, %c0_52] : memref<32x96xbf16, #tpu.memory_space<vmem>>, vector<32x96xbf16>
    %cst_53 = arith.constant dense<0.000000e+00> : vector<64x96xf32>
    %114 = tpu.matmul %112, %113, %cst_53 {dimension_numbers = #tpu.dot_dimension_numbers<[1], [0], [0], [1], [0, 0, 1, 1], [], []>} : vector<64x32xbf16>, vector<32x96xbf16>, vector<64x96xf32> -> vector<64x96xf32>
    %c0_54 = arith.constant 0 : index
    %c0_55 = arith.constant 0 : index
    %115 = vector.load %arg15[%c0_54, %c0_55] : memref<1x96xf32, #tpu.memory_space<vmem>>, vector<1x96xf32>
    %116 = vector.broadcast %115 : vector<1x96xf32> to vector<64x96xf32>
    %117 = arith.addf %114, %116 : vector<64x96xf32>
    %cst_56 = arith.constant 5.000000e-01 : f32
    %118 = vector.broadcast %cst_56 : f32 to vector<64x96xf32>
    %119 = arith.mulf %118, %117 : vector<64x96xf32>
    %cst_57 = arith.constant 4.471500e-02 : f32
    %120 = vector.broadcast %cst_57 : f32 to vector<64x96xf32>
    %121 = arith.mulf %120, %117 : vector<64x96xf32>
    %122 = arith.mulf %121, %117 : vector<64x96xf32>
    %123 = arith.mulf %122, %117 : vector<64x96xf32>
    %124 = arith.addf %117, %123 : vector<64x96xf32>
    %cst_58 = arith.constant 0.797884583 : f32
    %125 = vector.broadcast %cst_58 : f32 to vector<64x96xf32>
    %126 = arith.mulf %125, %124 : vector<64x96xf32>
    %127 = math.tanh %126 : vector<64x96xf32>
    %cst_59 = arith.constant 1.000000e+00 : f32
    %128 = vector.broadcast %cst_59 : f32 to vector<64x96xf32>
    %129 = arith.addf %128, %127 : vector<64x96xf32>
    %130 = arith.mulf %119, %129 : vector<64x96xf32>
    %131 = arith.truncf %130 : vector<64x96xf32> to vector<64x96xbf16>
    %c0_60 = arith.constant 0 : index
    %c0_61 = arith.constant 0 : index
    %132 = vector.load %arg16[%c0_60, %c0_61] : memref<96x32xbf16, #tpu.memory_space<vmem>>, vector<96x32xbf16>
    %cst_62 = arith.constant dense<0.000000e+00> : vector<64x32xf32>
    %133 = tpu.matmul %131, %132, %cst_62 {dimension_numbers = #tpu.dot_dimension_numbers<[1], [0], [0], [1], [0, 0, 1, 1], [], []>} : vector<64x96xbf16>, vector<96x32xbf16>, vector<64x32xf32> -> vector<64x32xf32>
    %c0_63 = arith.constant 0 : index
    %c0_64 = arith.constant 0 : index
    %134 = vector.load %arg17[%c0_63, %c0_64] : memref<1x32xf32, #tpu.memory_space<vmem>>, vector<1x32xf32>
    %135 = vector.broadcast %134 : vector<1x32xf32> to vector<64x32xf32>
    %136 = arith.addf %133, %135 : vector<64x32xf32>
    %c0_65 = arith.constant 0 : index
    %c0_66 = arith.constant 0 : index
    %137 = vector.load %arg11[%c0_65, %c0_66] : memref<1x32xf32, #tpu.memory_space<vmem>>, vector<1x32xf32>
    %138 = vector.broadcast %137 : vector<1x32xf32> to vector<64x32xf32>
    %139 = arith.mulf %138, %136 : vector<64x32xf32>
    %140 = arith.addf %89, %139 : vector<64x32xf32>
    %c0_67 = arith.constant 0 : index
    %c0_68 = arith.constant 0 : index
    %c0_69 = arith.constant 0 : index
    %141 = vector.load %arg18[%c0_67, %c0_68, %c0_69] : memref<1x64x32xf32, #tpu.memory_space<vmem>>, vector<1x64x32xf32>
    %142 = vector.shape_cast %141 : vector<1x64x32xf32> to vector<64x32xf32>
    %143 = vector.shape_cast %140 : vector<64x32xf32> to vector<1x64x32xf32>
    tpu.vector_store %arg18[%c0_67, %c0_68, %c0_69], %143 {strides = array<i32>} : memref<1x64x32xf32, #tpu.memory_space<vmem>>, vector<1x64x32xf32>,
    return
  }
  func.func @transform_0(%arg0: i32) -> (i32, i32, i32) {
    %c0_i32 = arith.constant 0 : i32
    %c0_i32_0 = arith.constant 0 : i32
    %c0_i32_1 = arith.constant 0 : i32
    return %arg0, %c0_i32, %c0_i32_0 : i32, i32, i32
  }
  func.func @transform_1(%arg0: i32) -> (i32, i32) {
    %c0_i32 = arith.constant 0 : i32
    %c0_i32_0 = arith.constant 0 : i32
    %c0_i32_1 = arith.constant 0 : i32
    return %c0_i32, %c0_i32_0 : i32, i32
  }
  func.func @transform_2(%arg0: i32) -> (i32, i32) {
    %c0_i32 = arith.constant 0 : i32
    %c0_i32_0 = arith.constant 0 : i32
    %c0_i32_1 = arith.constant 0 : i32
    return %c0_i32, %c0_i32_0 : i32, i32
  }
  func.func @transform_3(%arg0: i32) -> (i32, i32) {
    %c0_i32 = arith.constant 0 : i32
    %c0_i32_0 = arith.constant 0 : i32
    %c0_i32_1 = arith.constant 0 : i32
    return %c0_i32, %c0_i32_0 : i32, i32
  }
  func.func @transform_4(%arg0: i32) -> (i32, i32) {
    %c0_i32 = arith.constant 0 : i32
    %c0_i32_0 = arith.constant 0 : i32
    %c0_i32_1 = arith.constant 0 : i32
    return %c0_i32, %c0_i32_0 : i32, i32
  }
  func.func @transform_5(%arg0: i32) -> (i32, i32) {
    %c0_i32 = arith.constant 0 : i32
    %c0_i32_0 = arith.constant 0 : i32
    %c0_i32_1 = arith.constant 0 : i32
    return %c0_i32, %c0_i32_0 : i32, i32
  }
  func.func @transform_6(%arg0: i32) -> (i32, i32, i32) {
    %c0_i32 = arith.constant 0 : i32
    %c0_i32_0 = arith.constant 0 : i32
    %c0_i32_1 = arith.constant 0 : i32
    %c0_i32_2 = arith.constant 0 : i32
    return %c0_i32, %c0_i32_0, %c0_i32_1 : i32, i32, i32
  }
  func.func @transform_7(%arg0: i32) -> (i32, i32) {
    %c0_i32 = arith.constant 0 : i32
    %c0_i32_0 = arith.constant 0 : i32
    %c0_i32_1 = arith.constant 0 : i32
    return %c0_i32, %c0_i32_0 : i32, i32
  }
  func.func @transform_8(%arg0: i32) -> (i32, i32) {
    %c0_i32 = arith.constant 0 : i32
    %c0_i32_0 = arith.constant 0 : i32
    %c0_i32_1 = arith.constant 0 : i32
    return %c0_i32, %c0_i32_0 : i32, i32
  }
  func.func @transform_9(%arg0: i32) -> (i32, i32) {
    %c0_i32 = arith.constant 0 : i32
    %c0_i32_0 = arith.constant 0 : i32
    %c0_i32_1 = arith.constant 0 : i32
    return %c0_i32, %c0_i32_0 : i32, i32
  }
  func.func @transform_10(%arg0: i32) -> (i32, i32) {
    %c0_i32 = arith.constant 0 : i32
    %c0_i32_0 = arith.constant 0 : i32
    %c0_i32_1 = arith.constant 0 : i32
    return %c0_i32, %c0_i32_0 : i32, i32
  }
  func.func @transform_11(%arg0: i32) -> (i32, i32) {
    %c0_i32 = arith.constant 0 : i32
    %c0_i32_0 = arith.constant 0 : i32
    %c0_i32_1 = arith.constant 0 : i32
    return %c0_i32, %c0_i32_0 : i32, i32
  }
  func.func @transform_12(%arg0: i32) -> (i32, i32) {
    %c0_i32 = arith.constant 0 : i32
    %c0_i32_0 = arith.constant 0 : i32
    %c0_i32_1 = arith.constant 0 : i32
    return %c0_i32, %c0_i32_0 : i32, i32
  }
  func.func @transform_13(%arg0: i32) -> (i32, i32) {
    %c0_i32 = arith.constant 0 : i32
    %c0_i32_0 = arith.constant 0 : i32
    %c0_i32_1 = arith.constant 0 : i32
    return %c0_i32, %c0_i32_0 : i32, i32
  }
  func.func @transform_14(%arg0: i32) -> (i32, i32) {
    %c0_i32 = arith.constant 0 : i32
    %c0_i32_0 = arith.constant 0 : i32
    %c0_i32_1 = arith.constant 0 : i32
    return %c0_i32, %c0_i32_0 : i32, i32
  }
  func.func @transform_15(%arg0: i32) -> (i32, i32) {
    %c0_i32 = arith.constant 0 : i32
    %c0_i32_0 = arith.constant 0 : i32
    %c0_i32_1 = arith.constant 0 : i32
    return %c0_i32, %c0_i32_0 : i32, i32
  }
  func.func @transform_16(%arg0: i32) -> (i32, i32) {
    %c0_i32 = arith.constant 0 : i32
    %c0_i32_0 = arith.constant 0 : i32
    %c0_i32_1 = arith.constant 0 : i32
    return %c0_i32, %c0_i32_0 : i32, i32
  }
  func.func @transform_17(%arg0: i32) -> (i32, i32, i32) {
    %c0_i32 = arith.constant 0 : i32
    %c0_i32_0 = arith.constant 0 : i32
    %c0_i32_1 = arith.constant 0 : i32
    return %arg0, %c0_i32, %c0_i32_0 : i32, i32, i32
  }
}

</mosaic_0001>

<llo_original>
// kernel: tpu_custom_call.1
$region0: #{tpu_custom_call.1}
  #allocation0 [shape = 'u32[]', space=smem, size = 0x4, offset = 0x4, fixed_abs, tag = 'smem constant byte address 0x4 - core index']
  #allocation1 [shape = 'u32[144,128]{1,0:T(1,128)}', space=vmem, size = 0x12000, scoped, tag = 'internal scratch']
  #allocation2 [shape = 'f32[64,32]{1,0:T(8,128)}', space=vmem, size = 0x8000, scoped, tag = 'scratch operand']
  %s0 = inlined_call_operand.vmem [shape: f32[2,64,32], index: 0, kind: input, shape index: {}]
  %s1 = inlined_call_operand.vmem [shape: f32[64,1], index: 1, kind: input, shape index: {}]
  %s2 = inlined_call_operand.vmem [shape: f32[1,32], index: 2, kind: input, shape index: {}]
  %s3 = inlined_call_operand.vmem [shape: f32[1,32], index: 3, kind: input, shape index: {}]
  %s4 = inlined_call_operand.vmem [shape: bf16[32,96], index: 4, kind: input, shape index: {}]
  %s5 = inlined_call_operand.vmem [shape: f32[1,96], index: 5, kind: input, shape index: {}]
  %s6 = inlined_call_operand.vmem [shape: f32[2,64,64], index: 6, kind: input, shape index: {}]
  %s7 = inlined_call_operand.vmem [shape: bf16[32,32], index: 7, kind: input, shape index: {}]
  %s8 = inlined_call_operand.vmem [shape: f32[1,32], index: 8, kind: input, shape index: {}]
  %s9 = inlined_call_operand.vmem [shape: f32[1,32], index: 9, kind: input, shape index: {}]
  %s10 = inlined_call_operand.vmem [shape: f32[1,32], index: 10, kind: input, shape index: {}]
  %s11 = inlined_call_operand.vmem [shape: f32[1,32], index: 11, kind: input, shape index: {}]
  %s12 = inlined_call_operand.vmem [shape: f32[1,32], index: 12, kind: input, shape index: {}]
  %s13 = inlined_call_operand.vmem [shape: bf16[32,96], index: 13, kind: input, shape index: {}]
  %s14 = inlined_call_operand.vmem [shape: f32[1,96], index: 14, kind: input, shape index: {}]
  %s15 = inlined_call_operand.vmem [shape: bf16[96,32], index: 15, kind: input, shape index: {}]
  %s16 = inlined_call_operand.vmem [shape: f32[1,32], index: 16, kind: input, shape index: {}]
  %s17 = inlined_call_operand.vmem [shape: f32[2,64,32], index: 17, kind: output, shape index: {}]
  %s18 = sld [smem:[#allocation0]]
  $region101: #{tpu_custom_call.1} parent=0
    _
  %s20 = ssub.s32 1, %s18
  %s21 = scalar_select 0, %s20, %s18
  loop: start=0, step=1, limit=4
  $region2: #{tpu_custom_call.1} parent=0 // loop_pre_header
    _
  $region3: #{tpu_custom_call.1} parent=0 // loop_header
    %s23 = sphi 0, %s27
    %p24 = scmp.ge.s32.totalorder %s23, 4
    %s33 = sphi 0, %s35
    %s36 = sphi 0, %s33
    %s37 = sphi 0, %s36
    %s53 = sphi 0, %s37
    %s57 = sphi 0, %s57
    %s59 = sphi 0, %s57
    %s60 = sphi 0, %s59
    %s74 = sphi 0, %s60
    %s78 = sphi 0, %s78
    %s80 = sphi 0, %s78
    %s81 = sphi 0, %s80
    %s95 = sphi 0, %s81
    %s99 = sphi 0, %s99
    %s101 = sphi 0, %s99
    %s102 = sphi 0, %s101
    %s116 = sphi 0, %s102
    %s120 = sphi 0, %s120
    %s122 = sphi 0, %s120
    %s123 = sphi 0, %s122
    %s137 = sphi 0, %s123
    %s141 = sphi 0, %s141
    %s143 = sphi 0, %s141
    %s144 = sphi 0, %s143
    %s158 = sphi 0, %s144
    %s162 = sphi 0, %s162
    %s164 = sphi 0, %s162
    %s165 = sphi 0, %s164
    %s179 = sphi 0, %s165
    %s183 = sphi 0, %s183
    %s185 = sphi 0, %s183
    %s186 = sphi 0, %s185
    %s200 = sphi 0, %s186
    %s204 = sphi 0, %s204
    %s206 = sphi 0, %s204
    %s207 = sphi 0, %s206
    %s221 = sphi 0, %s207
    %s225 = sphi 0, %s225
    %s227 = sphi 0, %s225
    %s228 = sphi 0, %s227
    %s242 = sphi 0, %s228
    %s246 = sphi 0, %s246
    %s248 = sphi 0, %s246
    %s249 = sphi 0, %s248
    %s263 = sphi 0, %s249
    %s267 = sphi 0, %s267
    %s269 = sphi 0, %s267
    %s270 = sphi 0, %s269
    %s284 = sphi 0, %s270
    %s288 = sphi 0, %s288
    %s290 = sphi 0, %s288
    %s291 = sphi 0, %s290
    %s305 = sphi 0, %s291
    %s309 = sphi 0, %s309
    %s311 = sphi 0, %s309
    %s312 = sphi 0, %s311
    %s326 = sphi 0, %s312
    %s330 = sphi 0, %s330
    %s332 = sphi 0, %s330
    %s333 = sphi 0, %s332
    %s347 = sphi 0, %s333
    %s351 = sphi 0, %s351
    %s353 = sphi 0, %s351
    %s354 = sphi 0, %s353
    %s368 = sphi 0, %s354
    %s372 = sphi 0, %s372
    %s374 = sphi 0, %s372
    %s375 = sphi 0, %s374
    %s389 = sphi 0, %s375
    %s395 = sphi 0, %s397
    %s398 = sphi 0, %s395
    %s399 = sphi 0, %s398
    %s415 = sphi 0, %s399
  $region4: #{tpu_custom_call.1} parent=0 // loop_header_branch
    %26 = sbr.rel (%p24) target = $region8
  $region5: #{tpu_custom_call.1} parent=0 // loop_body
    %s28 = ssub.s32 %s23, 1
    %s29 = ssub.s32 %s23, 2
    %s30 = sadd.s32 %s23, 1
    %s31 = ssub.s32 %s23, %s30
    %p32 = scmp.eq.s32.totalorder %s31, 0
    %s34 = sadd.s32 %s33, 1
    %s35 = scalar_select %p32, %s33, %s34
    %p38 = pneg %p32
    %p39 = scmp.eq.s32.totalorder %s23, 1
    %p40 = por %p38, %p39
    %p41 = scmp.ne.s32.totalorder %s33, %s36
    %p42 = scmp.eq.s32.totalorder %s23, 0
    %p43 = por %p41, %p42
    %p44 = scmp.ne.s32.totalorder %s33, %s36
    %p45 = scmp.eq.s32.totalorder %s28, 1
    %p46 = por %p44, %p45
    %p47 = scmp.ne.s32.totalorder %s36, %s37
    %p48 = scmp.eq.s32.totalorder %s28, 0
    %p49 = por %p47, %p48
    %p50 = scmp.ne.s32.totalorder %s36, %s37
    %p51 = scmp.eq.s32.totalorder %s29, 1
    %p52 = por %p50, %p51
    %p54 = scmp.ne.s32.totalorder %s37, %s53
    %p55 = scmp.eq.s32.totalorder %s29, 0
    %p56 = por %p54, %p55
    %s58 = sadd.s32 %s57, 1
    %p61 = scmp.eq.s32.totalorder %s23, 1
    %p62 = scmp.ne.s32.totalorder %s57, %s59
    %p63 = scmp.eq.s32.totalorder %s23, 0
    %p64 = por %p62, %p63
    %p65 = scmp.ne.s32.totalorder %s57, %s59
    %p66 = scmp.eq.s32.totalorder %s28, 1
    %p67 = por %p65, %p66
    %p68 = scmp.ne.s32.totalorder %s59, %s60
    %p69 = scmp.eq.s32.totalorder %s28, 0
    %p70 = por %p68, %p69
    %p71 = scmp.ne.s32.totalorder %s59, %s60
    %p72 = scmp.eq.s32.totalorder %s29, 1
    %p73 = por %p71, %p72
    %p75 = scmp.ne.s32.totalorder %s60, %s74
    %p76 = scmp.eq.s32.totalorder %s29, 0
    %p77 = por %p75, %p76
    %s79 = sadd.s32 %s78, 1
    %p82 = scmp.eq.s32.totalorder %s23, 1
    %p83 = scmp.ne.s32.totalorder %s78, %s80
    %p84 = scmp.eq.s32.totalorder %s23, 0
    %p85 = por %p83, %p84
    %p86 = scmp.ne.s32.totalorder %s78, %s80
    %p87 = scmp.eq.s32.totalorder %s28, 1
    %p88 = por %p86, %p87
    %p89 = scmp.ne.s32.totalorder %s80, %s81
    %p90 = scmp.eq.s32.totalorder %s28, 0
    %p91 = por %p89, %p90
    %p92 = scmp.ne.s32.totalorder %s80, %s81
    %p93 = scmp.eq.s32.totalorder %s29, 1
    %p94 = por %p92, %p93
    %p96 = scmp.ne.s32.totalorder %s81, %s95
    %p97 = scmp.eq.s32.totalorder %s29, 0
    %p98 = por %p96, %p97
    %s100 = sadd.s32 %s99, 1
    %p103 = scmp.eq.s32.totalorder %s23, 1
    %p104 = scmp.ne.s32.totalorder %s99, %s101
    %p105 = scmp.eq.s32.totalorder %s23, 0
    %p106 = por %p104, %p105
    %p107 = scmp.ne.s32.totalorder %s99, %s101
    %p108 = scmp.eq.s32.totalorder %s28, 1
    %p109 = por %p107, %p108
    %p110 = scmp.ne.s32.totalorder %s101, %s102
    %p111 = scmp.eq.s32.totalorder %s28, 0
    %p112 = por %p110, %p111
    %p113 = scmp.ne.s32.totalorder %s101, %s102
    %p114 = scmp.eq.s32.totalorder %s29, 1
    %p115 = por %p113, %p114
    %p117 = scmp.ne.s32.totalorder %s102, %s116
    %p118 = scmp.eq.s32.totalorder %s29, 0
    %p119 = por %p117, %p118
    %s121 = sadd.s32 %s120, 1
    %p124 = scmp.eq.s32.totalorder %s23, 1
    %p125 = scmp.ne.s32.totalorder %s120, %s122
    %p126 = scmp.eq.s32.totalorder %s23, 0
    %p127 = por %p125, %p126
    %p128 = scmp.ne.s32.totalorder %s120, %s122
    %p129 = scmp.eq.s32.totalorder %s28, 1
    %p130 = por %p128, %p129
    %p131 = scmp.ne.s32.totalorder %s122, %s123
    %p132 = scmp.eq.s32.totalorder %s28, 0
    %p133 = por %p131, %p132
    %p134 = scmp.ne.s32.totalorder %s122, %s123
    %p135 = scmp.eq.s32.totalorder %s29, 1
    %p136 = por %p134, %p135
    %p138 = scmp.ne.s32.totalorder %s123, %s137
    %p139 = scmp.eq.s32.totalorder %s29, 0
    %p140 = por %p138, %p139
    %s142 = sadd.s32 %s141, 1
    %p145 = scmp.eq.s32.totalorder %s23, 1
    %p146 = scmp.ne.s32.totalorder %s141, %s143
    %p147 = scmp.eq.s32.totalorder %s23, 0
    %p148 = por %p146, %p147
    %p149 = scmp.ne.s32.totalorder %s141, %s143
    %p150 = scmp.eq.s32.totalorder %s28, 1
    %p151 = por %p149, %p150
    %p152 = scmp.ne.s32.totalorder %s143, %s144
    %p153 = scmp.eq.s32.totalorder %s28, 0
    %p154 = por %p152, %p153
    %p155 = scmp.ne.s32.totalorder %s143, %s144
    %p156 = scmp.eq.s32.totalorder %s29, 1
    %p157 = por %p155, %p156
    %p159 = scmp.ne.s32.totalorder %s144, %s158
    %p160 = scmp.eq.s32.totalorder %s29, 0
    %p161 = por %p159, %p160
    %s163 = sadd.s32 %s162, 1
    %p166 = scmp.eq.s32.totalorder %s23, 1
    %p167 = scmp.ne.s32.totalorder %s162, %s164
    %p168 = scmp.eq.s32.totalorder %s23, 0
    %p169 = por %p167, %p168
    %p170 = scmp.ne.s32.totalorder %s162, %s164
    %p171 = scmp.eq.s32.totalorder %s28, 1
    %p172 = por %p170, %p171
    %p173 = scmp.ne.s32.totalorder %s164, %s165
    %p174 = scmp.eq.s32.totalorder %s28, 0
    %p175 = por %p173, %p174
    %p176 = scmp.ne.s32.totalorder %s164, %s165
    %p177 = scmp.eq.s32.totalorder %s29, 1
    %p178 = por %p176, %p177
    %p180 = scmp.ne.s32.totalorder %s165, %s179
    %p181 = scmp.eq.s32.totalorder %s29, 0
    %p182 = por %p180, %p181
    %s184 = sadd.s32 %s183, 1
    %p187 = scmp.eq.s32.totalorder %s23, 1
    %p188 = scmp.ne.s32.totalorder %s183, %s185
    %p189 = scmp.eq.s32.totalorder %s23, 0
    %p190 = por %p188, %p189
    %p191 = scmp.ne.s32.totalorder %s183, %s185
    %p192 = scmp.eq.s32.totalorder %s28, 1
    %p193 = por %p191, %p192
    %p194 = scmp.ne.s32.totalorder %s185, %s186
    %p195 = scmp.eq.s32.totalorder %s28, 0
    %p196 = por %p194, %p195
    %p197 = scmp.ne.s32.totalorder %s185, %s186
    %p198 = scmp.eq.s32.totalorder %s29, 1
    %p199 = por %p197, %p198
    %p201 = scmp.ne.s32.totalorder %s186, %s200
    %p202 = scmp.eq.s32.totalorder %s29, 0
    %p203 = por %p201, %p202
    %s205 = sadd.s32 %s204, 1
    %p208 = scmp.eq.s32.totalorder %s23, 1
    %p209 = scmp.ne.s32.totalorder %s204, %s206
    %p210 = scmp.eq.s32.totalorder %s23, 0
    %p211 = por %p209, %p210
    %p212 = scmp.ne.s32.totalorder %s204, %s206
    %p213 = scmp.eq.s32.totalorder %s28, 1
    %p214 = por %p212, %p213
    %p215 = scmp.ne.s32.totalorder %s206, %s207
    %p216 = scmp.eq.s32.totalorder %s28, 0
    %p217 = por %p215, %p216
    %p218 = scmp.ne.s32.totalorder %s206, %s207
    %p219 = scmp.eq.s32.totalorder %s29, 1
    %p220 = por %p218, %p219
    %p222 = scmp.ne.s32.totalorder %s207, %s221
    %p223 = scmp.eq.s32.totalorder %s29, 0
    %p224 = por %p222, %p223
    %s226 = sadd.s32 %s225, 1
    %p229 = scmp.eq.s32.totalorder %s23, 1
    %p230 = scmp.ne.s32.totalorder %s225, %s227
    %p231 = scmp.eq.s32.totalorder %s23, 0
    %p232 = por %p230, %p231
    %p233 = scmp.ne.s32.totalorder %s225, %s227
    %p234 = scmp.eq.s32.totalorder %s28, 1
    %p235 = por %p233, %p234
    %p236 = scmp.ne.s32.totalorder %s227, %s228
    %p237 = scmp.eq.s32.totalorder %s28, 0
    %p238 = por %p236, %p237
    %p239 = scmp.ne.s32.totalorder %s227, %s228
    %p240 = scmp.eq.s32.totalorder %s29, 1
    %p241 = por %p239, %p240
    %p243 = scmp.ne.s32.totalorder %s228, %s242
    %p244 = scmp.eq.s32.totalorder %s29, 0
    %p245 = por %p243, %p244
    %s247 = sadd.s32 %s246, 1
    %p250 = scmp.eq.s32.totalorder %s23, 1
    %p251 = scmp.ne.s32.totalorder %s246, %s248
    %p252 = scmp.eq.s32.totalorder %s23, 0
    %p253 = por %p251, %p252
    %p254 = scmp.ne.s32.totalorder %s246, %s248
    %p255 = scmp.eq.s32.totalorder %s28, 1
    %p256 = por %p254, %p255
    %p257 = scmp.ne.s32.totalorder %s248, %s249
    %p258 = scmp.eq.s32.totalorder %s28, 0
    %p259 = por %p257, %p258
    %p260 = scmp.ne.s32.totalorder %s248, %s249
    %p261 = scmp.eq.s32.totalorder %s29, 1
    %p262 = por %p260, %p261
    %p264 = scmp.ne.s32.totalorder %s249, %s263
    %p265 = scmp.eq.s32.totalorder %s29, 0
    %p266 = por %p264, %p265
    %s268 = sadd.s32 %s267, 1
    %p271 = scmp.eq.s32.totalorder %s23, 1
    %p272 = scmp.ne.s32.totalorder %s267, %s269
    %p273 = scmp.eq.s32.totalorder %s23, 0
    %p274 = por %p272, %p273
    %p275 = scmp.ne.s32.totalorder %s267, %s269
    %p276 = scmp.eq.s32.totalorder %s28, 1
    %p277 = por %p275, %p276
    %p278 = scmp.ne.s32.totalorder %s269, %s270
    %p279 = scmp.eq.s32.totalorder %s28, 0
    %p280 = por %p278, %p279
    %p281 = scmp.ne.s32.totalorder %s269, %s270
    %p282 = scmp.eq.s32.totalorder %s29, 1
    %p283 = por %p281, %p282
    %p285 = scmp.ne.s32.totalorder %s270, %s284
    %p286 = scmp.eq.s32.totalorder %s29, 0
    %p287 = por %p285, %p286
    %s289 = sadd.s32 %s288, 1
    %p292 = scmp.eq.s32.totalorder %s23, 1
    %p293 = scmp.ne.s32.totalorder %s288, %s290
    %p294 = scmp.eq.s32.totalorder %s23, 0
    %p295 = por %p293, %p294
    %p296 = scmp.ne.s32.totalorder %s288, %s290
    %p297 = scmp.eq.s32.totalorder %s28, 1
    %p298 = por %p296, %p297
    %p299 = scmp.ne.s32.totalorder %s290, %s291
    %p300 = scmp.eq.s32.totalorder %s28, 0
    %p301 = por %p299, %p300
    %p302 = scmp.ne.s32.totalorder %s290, %s291
    %p303 = scmp.eq.s32.totalorder %s29, 1
    %p304 = por %p302, %p303
    %p306 = scmp.ne.s32.totalorder %s291, %s305
    %p307 = scmp.eq.s32.totalorder %s29, 0
    %p308 = por %p306, %p307
    %s310 = sadd.s32 %s309, 1
    %p313 = scmp.eq.s32.totalorder %s23, 1
    %p314 = scmp.ne.s32.totalorder %s309, %s311
    %p315 = scmp.eq.s32.totalorder %s23, 0
    %p316 = por %p314, %p315
    %p317 = scmp.ne.s32.totalorder %s309, %s311
    %p318 = scmp.eq.s32.totalorder %s28, 1
    %p319 = por %p317, %p318
    %p320 = scmp.ne.s32.totalorder %s311, %s312
    %p321 = scmp.eq.s32.totalorder %s28, 0
    %p322 = por %p320, %p321
    %p323 = scmp.ne.s32.totalorder %s311, %s312
    %p324 = scmp.eq.s32.totalorder %s29, 1
    %p325 = por %p323, %p324
    %p327 = scmp.ne.s32.totalorder %s312, %s326
    %p328 = scmp.eq.s32.totalorder %s29, 0
    %p329 = por %p327, %p328
    %s331 = sadd.s32 %s330, 1
    %p334 = scmp.eq.s32.totalorder %s23, 1
    %p335 = scmp.ne.s32.totalorder %s330, %s332
    %p336 = scmp.eq.s32.totalorder %s23, 0
    %p337 = por %p335, %p336
    %p338 = scmp.ne.s32.totalorder %s330, %s332
    %p339 = scmp.eq.s32.totalorder %s28, 1
    %p340 = por %p338, %p339
    %p341 = scmp.ne.s32.totalorder %s332, %s333
    %p342 = scmp.eq.s32.totalorder %s28, 0
    %p343 = por %p341, %p342
    %p344 = scmp.ne.s32.totalorder %s332, %s333
    %p345 = scmp.eq.s32.totalorder %s29, 1
    %p346 = por %p344, %p345
    %p348 = scmp.ne.s32.totalorder %s333, %s347
    %p349 = scmp.eq.s32.totalorder %s29, 0
    %p350 = por %p348, %p349
    %s352 = sadd.s32 %s351, 1
    %p355 = scmp.eq.s32.totalorder %s23, 1
    %p356 = scmp.ne.s32.totalorder %s351, %s353
    %p357 = scmp.eq.s32.totalorder %s23, 0
    %p358 = por %p356, %p357
    %p359 = scmp.ne.s32.totalorder %s351, %s353
    %p360 = scmp.eq.s32.totalorder %s28, 1
    %p361 = por %p359, %p360
    %p362 = scmp.ne.s32.totalorder %s353, %s354
    %p363 = scmp.eq.s32.totalorder %s28, 0
    %p364 = por %p362, %p363
    %p365 = scmp.ne.s32.totalorder %s353, %s354
    %p366 = scmp.eq.s32.totalorder %s29, 1
    %p367 = por %p365, %p366
    %p369 = scmp.ne.s32.totalorder %s354, %s368
    %p370 = scmp.eq.s32.totalorder %s29, 0
    %p371 = por %p369, %p370
    %s373 = sadd.s32 %s372, 1
    %p376 = scmp.eq.s32.totalorder %s23, 1
    %p377 = scmp.ne.s32.totalorder %s372, %s374
    %p378 = scmp.eq.s32.totalorder %s23, 0
    %p379 = por %p377, %p378
    %p380 = scmp.ne.s32.totalorder %s372, %s374
    %p381 = scmp.eq.s32.totalorder %s28, 1
    %p382 = por %p380, %p381
    %p383 = scmp.ne.s32.totalorder %s374, %s375
    %p384 = scmp.eq.s32.totalorder %s28, 0
    %p385 = por %p383, %p384
    %p386 = scmp.ne.s32.totalorder %s374, %s375
    %p387 = scmp.eq.s32.totalorder %s29, 1
    %p388 = por %p386, %p387
    %p390 = scmp.ne.s32.totalorder %s375, %s389
    %p391 = scmp.eq.s32.totalorder %s29, 0
    %p392 = por %p390, %p391
    %s393 = ssub.s32 %s23, %s30
    %p394 = scmp.eq.s32.totalorder %s393, 0
    %s396 = sadd.s32 %s395, 1
    %s397 = scalar_select %p394, %s395, %s396
    %p400 = pneg %p394
    %p401 = scmp.eq.s32.totalorder %s23, 1
    %p402 = por %p400, %p401
    %p403 = scmp.ne.s32.totalorder %s395, %s398
    %p404 = scmp.eq.s32.totalorder %s23, 0
    %p405 = por %p403, %p404
    %p406 = scmp.ne.s32.totalorder %s395, %s398
    %p407 = scmp.eq.s32.totalorder %s28, 1
    %p408 = por %p406, %p407
    %p409 = scmp.ne.s32.totalorder %s398, %s399
    %p410 = scmp.eq.s32.totalorder %s28, 0
    %p411 = por %p409, %p410
    %p412 = scmp.ne.s32.totalorder %s398, %s399
    %p413 = scmp.eq.s32.totalorder %s29, 1
    %p414 = por %p412, %p413
    %p416 = scmp.ne.s32.totalorder %s399, %s415
    %p417 = scmp.eq.s32.totalorder %s29, 0
    %p418 = por %p416, %p417
    %p419 = scmp.le.s32.totalorder 1, %s23
    %p420 = scmp.lt.s32.totalorder %s23, 3
    %p421 = pnand %p419, %p420
    %p422 = pneg %p421
    // Predicated region
    $region9: #{tpu_custom_call.1} parent=5 // pred_check
      _
    $region10: #{tpu_custom_call.1} parent=5 // pred_check_branch
      %424 = sbr.rel (%p421) target = $region12
    $region11: #{tpu_custom_call.1} parent=5 // pred_region
      %s425 = ssub.s32 %s23, 1
      // Predicated region
      $region13: #{tpu_custom_call.1} parent=11 // pred_check
        %p426 = pneg %p70
      $region14: #{tpu_custom_call.1} parent=11 // pred_check_branch
        %428 = sbr.rel (%p426) target = $region16
      $region15: #{tpu_custom_call.1} parent=11 // pred_region
        _
      $region16: #{tpu_custom_call.1} parent=11 // pred_fallthru
        _
      // Predicated region
      $region17: #{tpu_custom_call.1} parent=11 // pred_check
        %p429 = pneg %p91
      $region18: #{tpu_custom_call.1} parent=11 // pred_check_branch
        %431 = sbr.rel (%p429) target = $region20
      $region19: #{tpu_custom_call.1} parent=11 // pred_region
        _
      $region20: #{tpu_custom_call.1} parent=11 // pred_fallthru
        _
      // Predicated region
      $region21: #{tpu_custom_call.1} parent=11 // pred_check
        %p432 = pneg %p112
      $region22: #{tpu_custom_call.1} parent=11 // pred_check_branch
        %434 = sbr.rel (%p432) target = $region24
      $region23: #{tpu_custom_call.1} parent=11 // pred_region
        _
      $region24: #{tpu_custom_call.1} parent=11 // pred_fallthru
        _
      // Predicated region
      $region25: #{tpu_custom_call.1} parent=11 // pred_check
        %p435 = pneg %p133
      $region26: #{tpu_custom_call.1} parent=11 // pred_check_branch
        %437 = sbr.rel (%p435) target = $region28
      $region27: #{tpu_custom_call.1} parent=11 // pred_region
        _
      $region28: #{tpu_custom_call.1} parent=11 // pred_fallthru
        _
      // Predicated region
      $region29: #{tpu_custom_call.1} parent=11 // pred_check
        %p438 = pneg %p154
      $region30: #{tpu_custom_call.1} parent=11 // pred_check_branch
        %440 = sbr.rel (%p438) target = $region32
      $region31: #{tpu_custom_call.1} parent=11 // pred_region
        _
      $region32: #{tpu_custom_call.1} parent=11 // pred_fallthru
        _
      // Predicated region
      $region33: #{tpu_custom_call.1} parent=11 // pred_check
        %p441 = pneg %p175
      $region34: #{tpu_custom_call.1} parent=11 // pred_check_branch
        %443 = sbr.rel (%p441) target = $region36
      $region35: #{tpu_custom_call.1} parent=11 // pred_region
        _
      $region36: #{tpu_custom_call.1} parent=11 // pred_fallthru
        _
      // Predicated region
      $region37: #{tpu_custom_call.1} parent=11 // pred_check
        %p444 = pneg %p196
      $region38: #{tpu_custom_call.1} parent=11 // pred_check_branch
        %446 = sbr.rel (%p444) target = $region40
      $region39: #{tpu_custom_call.1} parent=11 // pred_region
        _
      $region40: #{tpu_custom_call.1} parent=11 // pred_fallthru
        _
      // Predicated region
      $region41: #{tpu_custom_call.1} parent=11 // pred_check
        %p447 = pneg %p217
      $region42: #{tpu_custom_call.1} parent=11 // pred_check_branch
        %449 = sbr.rel (%p447) target = $region44
      $region43: #{tpu_custom_call.1} parent=11 // pred_region
        _
      $region44: #{tpu_custom_call.1} parent=11 // pred_fallthru
        _
      // Predicated region
      $region45: #{tpu_custom_call.1} parent=11 // pred_check
        %p450 = pneg %p238
      $region46: #{tpu_custom_call.1} parent=11 // pred_check_branch
        %452 = sbr.rel (%p450) target = $region48
      $region47: #{tpu_custom_call.1} parent=11 // pred_region
        _
      $region48: #{tpu_custom_call.1} parent=11 // pred_fallthru
        _
      // Predicated region
      $region49: #{tpu_custom_call.1} parent=11 // pred_check
        %p453 = pneg %p259
      $region50: #{tpu_custom_call.1} parent=11 // pred_check_branch
        %455 = sbr.rel (%p453) target = $region52
      $region51: #{tpu_custom_call.1} parent=11 // pred_region
        _
      $region52: #{tpu_custom_call.1} parent=11 // pred_fallthru
        _
      // Predicated region
      $region53: #{tpu_custom_call.1} parent=11 // pred_check
        %p456 = pneg %p280
      $region54: #{tpu_custom_call.1} parent=11 // pred_check_branch
        %458 = sbr.rel (%p456) target = $region56
      $region55: #{tpu_custom_call.1} parent=11 // pred_region
        _
      $region56: #{tpu_custom_call.1} parent=11 // pred_fallthru
        _
      // Predicated region
      $region57: #{tpu_custom_call.1} parent=11 // pred_check
        %p459 = pneg %p301
      $region58: #{tpu_custom_call.1} parent=11 // pred_check_branch
        %461 = sbr.rel (%p459) target = $region60
      $region59: #{tpu_custom_call.1} parent=11 // pred_region
        _
      $region60: #{tpu_custom_call.1} parent=11 // pred_fallthru
        _
      // Predicated region
      $region61: #{tpu_custom_call.1} parent=11 // pred_check
        %p462 = pneg %p322
      $region62: #{tpu_custom_call.1} parent=11 // pred_check_branch
        %464 = sbr.rel (%p462) target = $region64
      $region63: #{tpu_custom_call.1} parent=11 // pred_region
        _
      $region64: #{tpu_custom_call.1} parent=11 // pred_fallthru
        _
      // Predicated region
      $region65: #{tpu_custom_call.1} parent=11 // pred_check
        %p465 = pneg %p343
      $region66: #{tpu_custom_call.1} parent=11 // pred_check_branch
        %467 = sbr.rel (%p465) target = $region68
      $region67: #{tpu_custom_call.1} parent=11 // pred_region
        _
      $region68: #{tpu_custom_call.1} parent=11 // pred_fallthru
        _
      // Predicated region
      $region69: #{tpu_custom_call.1} parent=11 // pred_check
        %p468 = pneg %p364
      $region70: #{tpu_custom_call.1} parent=11 // pred_check_branch
        %470 = sbr.rel (%p468) target = $region72
      $region71: #{tpu_custom_call.1} parent=11 // pred_region
        _
      $region72: #{tpu_custom_call.1} parent=11 // pred_fallthru
        _
      // Predicated region
      $region73: #{tpu_custom_call.1} parent=11 // pred_check
        %p471 = pneg %p385
      $region74: #{tpu_custom_call.1} parent=11 // pred_check_branch
        %473 = sbr.rel (%p471) target = $region76
      $region75: #{tpu_custom_call.1} parent=11 // pred_region
        _
      $region76: #{tpu_custom_call.1} parent=11 // pred_fallthru
        _
    $region12: #{tpu_custom_call.1} parent=5 // pred_fallthru
      _
    %p474 = scmp.lt.s32.totalorder %s23, 2
    // Predicated region
    $region77: #{tpu_custom_call.1} parent=5 // pred_check
      %p475 = pneg %p474
    $region78: #{tpu_custom_call.1} parent=5 // pred_check_branch
      %477 = sbr.rel (%p475) target = $region80
    $region79: #{tpu_custom_call.1} parent=5 // pred_region
      // Predicated region
      $region81: #{tpu_custom_call.1} parent=79 // pred_check
        %p478 = pneg %p43
      $region82: #{tpu_custom_call.1} parent=79 // pred_check_branch
        %480 = sbr.rel (%p478) target = $region84
      $region83: #{tpu_custom_call.1} parent=79 // pred_region
        %p481 = scmp.lt.s32.totalorder %s23, 1
        %s482 = scalar_select %p481, %s23, 1
        %s483 = smul.addr %s482, 8
        %s484 = smul.addr %s483, 8
        %s485 = scalar_lea.vmem %s0, %s484
      $region84: #{tpu_custom_call.1} parent=79 // pred_fallthru
        _
    $region80: #{tpu_custom_call.1} parent=5 // pred_fallthru
      _
    %p486 = scmp.le.s32.totalorder 1, %s23
    %p487 = scmp.lt.s32.totalorder %s23, 3
    %p488 = pnand %p486, %p487
    %p489 = pneg %p488
    // Predicated region
    $region85: #{tpu_custom_call.1} parent=5 // pred_check
      _
    $region86: #{tpu_custom_call.1} parent=5 // pred_check_branch
      %491 = sbr.rel (%p488) target = $region88
    $region87: #{tpu_custom_call.1} parent=5 // pred_region
      %s492 = ssub.s32 %s23, 1
      %p493 = scmp.lt.s32.totalorder %s28, 1
      %s494 = scalar_select %p493, %s28, 1
      %s495 = smul.addr %s494, 8
      %s496 = smul.addr %s495, 8
      %s497 = scalar_lea.vmem %s0, %s496
      %p498 = pneg %p49
      %p499 = pneg %p46
      %p500 = pneg %p70
      %p501 = pneg %p67
      %p502 = pneg %p91
      %p503 = pneg %p88
      %p504 = pneg %p112
      %p505 = pneg %p109
      %p506 = pneg %p133
      %p507 = pneg %p130
      %p508 = pneg %p154
      %p509 = pneg %p151
      %p510 = pneg %p175
      %p511 = pneg %p172
      %p512 = pneg %p196
      %p513 = pneg %p193
      %p514 = pneg %p217
      %p515 = pneg %p214
      %p516 = pneg %p238
      %p517 = pneg %p235
      %p518 = pneg %p259
      %p519 = pneg %p256
      %p520 = pneg %p280
      %p521 = pneg %p277
      %p522 = pneg %p301
      %p523 = pneg %p298
      %p524 = pneg %p322
      %p525 = pneg %p319
      %p526 = pneg %p343
      %p527 = pneg %p340
      %p528 = pneg %p364
      %p529 = pneg %p361
      %p530 = pneg %p385
      %p531 = pneg %p382
      %p532 = pneg %p411
      %p533 = pneg %p408
      %p534 = scmp.lt.s32.totalorder %s28, 1
      %s535 = scalar_select %p534, %s28, 1
      %s536 = smul.addr %s535, 8
      %s537 = smul.addr %s536, 8
      %s538 = scalar_lea.vmem %s17, %s537
      %p539 = scmp.lt.s32.totalorder %s28, 1
      %s540 = scalar_select %p539, %s28, 1
      %s541 = smul.addr %s540, 8
      %s542 = smul.addr %s541, 8
      %s543 = scalar_lea.vmem %s0, %s542
      %p544 = scmp.lt.s32.totalorder %s28, 1
      %s545 = scalar_select %p544, %s28, 1
      %s546 = smul.addr %s545, 8
      %s547 = smul.addr %s546, 8
      %s548 = scalar_lea.vmem %s17, %s547
      %v550 = vld [vmem:[%s543] sm:$0xff]
      %v551 = vld [vmem:[%s543 + $0x8] sm:$0xff]
      %v552 = vld [vmem:[%s543 + $0x10] sm:$0xff]
      %v553 = vld [vmem:[%s543 + $0x18] sm:$0xff]
      %v554 = vld [vmem:[%s543 + $0x20] sm:$0xff]
      %v555 = vld [vmem:[%s543 + $0x28] sm:$0xff]
      %v556 = vld [vmem:[%s543 + $0x30] sm:$0xff]
      %v557 = vld [vmem:[%s543 + $0x38] sm:$0xff]
      %v558 = vld [vmem:[%s2] sm:$0x1]
      %v559 = vld [vmem:[%s3] sm:$0x1]
      %vm560 = vcmask 261120
      %v561 = vsel %vm560, %v550, 0.0
      %562 = vadd.xlane.f32.xlu0 %v561
      %v563 = vpop.xlane.xlu0 %562
      %v564 = vsel %vm560, %v551, 0.0
      %565 = vadd.xlane.f32.xlu0 %v564
      %v566 = vpop.xlane.xlu0 %565
      %v567 = vsel %vm560, %v552, 0.0
      %568 = vadd.xlane.f32.xlu0 %v567
      %v569 = vpop.xlane.xlu0 %568
      %v570 = vsel %vm560, %v553, 0.0
      %571 = vadd.xlane.f32.xlu0 %v570
      %v572 = vpop.xlane.xlu0 %571
      %v573 = vsel %vm560, %v554, 0.0
      %574 = vadd.xlane.f32.xlu0 %v573
      %v575 = vpop.xlane.xlu0 %574
      %v576 = vsel %vm560, %v555, 0.0
      %577 = vadd.xlane.f32.xlu0 %v576
      %v578 = vpop.xlane.xlu0 %577
      %v579 = vsel %vm560, %v556, 0.0
      %580 = vadd.xlane.f32.xlu0 %v579
      %v581 = vpop.xlane.xlu0 %580
      %v582 = vsel %vm560, %v557, 0.0
      %583 = vadd.xlane.f32.xlu0 %v582
      %v584 = vpop.xlane.xlu0 %583
      %v585 = vrcp.pop 32.0
      %v586 = vmul.f32 %v563, %v585
      %v587 = vmul.f32 %v566, %v585
      %v588 = vmul.f32 %v569, %v585
      %v589 = vmul.f32 %v572, %v585
      %v590 = vmul.f32 %v575, %v585
      %v591 = vmul.f32 %v578, %v585
      %v592 = vmul.f32 %v581, %v585
      %v593 = vmul.f32 %v584, %v585
      %v594 = vsub.f32 %v550, %v586
      %v595 = vsub.f32 %v551, %v587
      %v596 = vsub.f32 %v552, %v588
      %v597 = vsub.f32 %v553, %v589
      %v598 = vsub.f32 %v554, %v590
      %v599 = vsub.f32 %v555, %v591
      %v600 = vsub.f32 %v556, %v592
      %v601 = vsub.f32 %v557, %v593
      %v602 = vmul.f32 %v594, %v594
      %v603 = vmul.f32 %v595, %v595
      %v604 = vmul.f32 %v596, %v596
      %v605 = vmul.f32 %v597, %v597
      %v606 = vmul.f32 %v598, %v598
      %v607 = vmul.f32 %v599, %v599
      %v608 = vmul.f32 %v600, %v600
      %v609 = vmul.f32 %v601, %v601
      %v610 = vsel %vm560, %v602, 0.0
      %611 = vadd.xlane.f32.xlu0 %v610
      %v612 = vpop.xlane.xlu0 %611
      %v613 = vsel %vm560, %v603, 0.0
      %614 = vadd.xlane.f32.xlu0 %v613
      %v615 = vpop.xlane.xlu0 %614
      %v616 = vsel %vm560, %v604, 0.0
      %617 = vadd.xlane.f32.xlu0 %v616
      %v618 = vpop.xlane.xlu0 %617
      %v619 = vsel %vm560, %v605, 0.0
      %620 = vadd.xlane.f32.xlu0 %v619
      %v621 = vpop.xlane.xlu0 %620
      %v622 = vsel %vm560, %v606, 0.0
      %623 = vadd.xlane.f32.xlu0 %v622
      %v624 = vpop.xlane.xlu0 %623
      %v625 = vsel %vm560, %v607, 0.0
      %626 = vadd.xlane.f32.xlu0 %v625
      %v627 = vpop.xlane.xlu0 %626
      %v628 = vsel %vm560, %v608, 0.0
      %629 = vadd.xlane.f32.xlu0 %v628
      %v630 = vpop.xlane.xlu0 %629
      %v631 = vsel %vm560, %v609, 0.0
      %632 = vadd.xlane.f32.xlu0 %v631
      %v633 = vpop.xlane.xlu0 %632
      %v634 = vmul.f32 %v612, %v585
      %v635 = vmul.f32 %v615, %v585
      %v636 = vmul.f32 %v618, %v585
      %v637 = vmul.f32 %v621, %v585
      %v638 = vmul.f32 %v624, %v585
      %v639 = vmul.f32 %v627, %v585
      %v640 = vmul.f32 %v630, %v585
      %v641 = vmul.f32 %v633, %v585
      %v642 = vadd.f32 %v634, 1e-05
      %v643 = vadd.f32 %v635, 1e-05
      %v644 = vadd.f32 %v636, 1e-05
      %v645 = vadd.f32 %v637, 1e-05
      %v646 = vadd.f32 %v638, 1e-05
      %v647 = vadd.f32 %v639, 1e-05
      %v648 = vadd.f32 %v640, 1e-05
      %v649 = vadd.f32 %v641, 1e-05
      %v650 = vrsqrt.pop %v642
      %v651 = vrsqrt.pop %v643
      %v652 = vrsqrt.pop %v644
      %v653 = vrsqrt.pop %v645
      %v654 = vrsqrt.pop %v646
      %v655 = vrsqrt.pop %v647
      %v656 = vrsqrt.pop %v648
      %v657 = vrsqrt.pop %v649
      %v658 = vmul.f32 %v594, %v650
      %v659 = vmul.f32 %v595, %v651
      %v660 = vmul.f32 %v596, %v652
      %v661 = vmul.f32 %v597, %v653
      %v662 = vmul.f32 %v598, %v654
      %v663 = vmul.f32 %v599, %v655
      %v664 = vmul.f32 %v600, %v656
      %v665 = vmul.f32 %v601, %v657
      %v667 = vlaneseq
      %v668 = vshrl.u32 %v667, 7
      %v669 = vsub.s32 0, %v668
      %v670 = vrot.slane %v558, %v669
      %v672 = vmul.f32 %v658, %v670
      %v673 = vmul.f32 %v659, %v670
      %v674 = vmul.f32 %v660, %v670
      %v675 = vmul.f32 %v661, %v670
      %v676 = vmul.f32 %v662, %v670
      %v677 = vmul.f32 %v663, %v670
      %v678 = vmul.f32 %v664, %v670
      %v679 = vmul.f32 %v665, %v670
      %v681 = vlaneseq
      %v682 = vshrl.u32 %v681, 7
      %v683 = vsub.s32 0, %v682
      %v684 = vrot.slane %v559, %v683
      %v686 = vadd.f32 %v672, %v684
      %v687 = vadd.f32 %v673, %v684
      %v688 = vadd.f32 %v674, %v684
      %v689 = vadd.f32 %v675, %v684
      %v690 = vadd.f32 %v676, %v684
      %v691 = vadd.f32 %v677, %v684
      %v692 = vadd.f32 %v678, %v684
      %v693 = vadd.f32 %v679, %v684
      %v694 = vld [vmem:[%s1] sm:$0xff]
      %v695 = vld [vmem:[%s1 + $0x8] sm:$0xff]
      %v696 = vld [vmem:[%s1 + $0x10] sm:$0xff]
      %v697 = vld [vmem:[%s1 + $0x18] sm:$0xff]
      %v698 = vld [vmem:[%s1 + $0x20] sm:$0xff]
      %v699 = vld [vmem:[%s1 + $0x28] sm:$0xff]
      %v700 = vld [vmem:[%s1 + $0x30] sm:$0xff]
      %v701 = vld [vmem:[%s1 + $0x38] sm:$0xff]
      %703 = vset.pattern.permute.xlu0 0
      %704 = vperm.xlu0 %703, %v694
      %v705 = vpop.permute.xlu0 %704
      %708 = vset.pattern.permute.xlu0 0
      %709 = vperm.xlu0 %708, %v695
      %v710 = vpop.permute.xlu0 %709
      %713 = vset.pattern.permute.xlu0 0
      %714 = vperm.xlu0 %713, %v696
      %v715 = vpop.permute.xlu0 %714
      %718 = vset.pattern.permute.xlu0 0
      %719 = vperm.xlu0 %718, %v697
      %v720 = vpop.permute.xlu0 %719
      %723 = vset.pattern.permute.xlu0 0
      %724 = vperm.xlu0 %723, %v698
      %v725 = vpop.permute.xlu0 %724
      %728 = vset.pattern.permute.xlu0 0
      %729 = vperm.xlu0 %728, %v699
      %v730 = vpop.permute.xlu0 %729
      %733 = vset.pattern.permute.xlu0 0
      %734 = vperm.xlu0 %733, %v700
      %v735 = vpop.permute.xlu0 %734
      %738 = vset.pattern.permute.xlu0 0
      %739 = vperm.xlu0 %738, %v701
      %v740 = vpop.permute.xlu0 %739
      %v742 = vmul.f32 %v686, %v705
      %v743 = vmul.f32 %v687, %v710
      %v744 = vmul.f32 %v688, %v715
      %v745 = vmul.f32 %v689, %v720
      %v746 = vmul.f32 %v690, %v725
      %v747 = vmul.f32 %v691, %v730
      %v748 = vmul.f32 %v692, %v735
      %v749 = vmul.f32 %v693, %v740
      %v750 = vpack.c.bf16 %v743, %v742
      %v751 = vpack.c.bf16 %v745, %v744
      %v752 = vpack.c.bf16 %v747, %v746
      %v753 = vpack.c.bf16 %v749, %v748
      %v754 = vld [vmem:[%s4] sm:$0xf]
      %v755 = vld [vmem:[%s4 + $0x4] sm:$0xf]
      %v756 = vld [vmem:[%s4 + $0x8] sm:$0xf]
      %v757 = vld [vmem:[%s4 + $0xc] sm:$0xf]
      %v758 = vld [vmem:[%s5] sm:$0x1]
      %v760 = vlaneseq
      %v761 = vshrl.u32 %v760, 7
      %v762 = vsub.s32 0, %v761
      %v763 = vrot.slane %v758, %v762
      %v769 = vunpack.c.l.b16 %v754
      %v770 = vunpack.c.l.b16 %v755
      %v771 = vunpack.c.l.b16 %v756
      %v772 = vunpack.c.l.b16 %v757
      %v773 = vpack.c.b16 %v770, %v769
      %v774 = vpack.c.b16 %v772, %v771
      %v778 = vsel %vm560, %v750, 0
      %v781 = vsel %vm560, %v751, 0
      %v784 = vsel %vm560, %v752, 0
      %v787 = vsel %vm560, %v753, 0
      %789 = vmatprep.subr.bf16.mxu0 0
      %790 = vmatpush1.bf16.msra.mxu0 0
      %791 = vmatprep.subr.bf16.mxu0 0
      %792 = vmatpush1.bf16.msra.mxu0 0
      %793 = vmatprep.subr.bf16.mxu0 0
      %794 = vmatpush1.bf16.msra.mxu0 0
      %795 = vmatprep.subr.bf16.mxu0 0
      %796 = vmatpush1.bf16.msra.mxu0 0
      %797 = vmatprep.subr.bf16.mxu0 0
      %798 = vmatpush1.bf16.msra.mxu0 0
      %799 = vmatprep.subr.bf16.mxu0 0
      %800 = vmatpush1.bf16.msra.mxu0 0
      %801 = vmatprep.subr.bf16.mxu0 0
      %802 = vmatpush1.bf16.msra.mxu0 %v774
      %803 = vmatprep.subr.bf16.mxu0 0
      %804 = vmatpush1.bf16.msra.mxu0 %v773
      %805 = vmatprep.subr.bf16.mxu0 0
      %806 = vmatpush2.bf16.msra.mxu0 0
      %807 = vmatprep.subr.bf16.mxu0 0
      %808 = vmatpush2.bf16.msra.mxu0 0
      %809 = vmatprep.subr.bf16.mxu0 0
      %810 = vmatpush2.bf16.msra.mxu0 0
      %811 = vmatprep.subr.bf16.mxu0 0
      %812 = vmatpush2.bf16.msra.mxu0 0
      %813 = vmatprep.subr.bf16.mxu0 0
      %814 = vmatpush2.bf16.msra.mxu0 0
      %815 = vmatprep.subr.bf16.mxu0 0
      %816 = vmatpush2.bf16.msra.mxu0 0
      %817 = vmatprep.subr.bf16.mxu0 0
      %818 = vmatpush2.bf16.msra.mxu0 0
      %819 = vmatprep.subr.bf16.mxu0 0
      %820 = vmatpush2.bf16.msra.mxu0 0
      %821 = vmatprep.mubr.bf16.mxu0 0
      %822 = vmatmul.mubr.bf16.gmra.mxu0 %v778
      %v823 = vpop.f32.mrf.mxu0
      %v824 = vadd.f32 %v763, %v823
      %v825 = vpop.f32.mrf.mxu0
      %v826 = vpop.f32.mrf.mxu0
      %v827 = vadd.f32 %v763, %v826
      %v828 = vpop.f32.mrf.mxu0
      %829 = vmatprep.mubr.bf16.mxu0 0
      %830 = vmatmul.mubr.bf16.gmra.mxu0 %v781
      %v831 = vpop.f32.mrf.mxu0
      %v832 = vadd.f32 %v763, %v831
      %v833 = vpop.f32.mrf.mxu0
      %v834 = vpop.f32.mrf.mxu0
      %v835 = vadd.f32 %v763, %v834
      %v836 = vpop.f32.mrf.mxu0
      %837 = vmatprep.mubr.bf16.mxu0 0
      %838 = vmatmul.mubr.bf16.gmra.mxu0 %v784
      %v839 = vpop.f32.mrf.mxu0
      %v840 = vadd.f32 %v763, %v839
      %v841 = vpop.f32.mrf.mxu0
      %v842 = vpop.f32.mrf.mxu0
      %v843 = vadd.f32 %v763, %v842
      %v844 = vpop.f32.mrf.mxu0
      %845 = vmatprep.mubr.bf16.mxu0 0
      %846 = vmatmul.mubr.bf16.gmra.mxu0 %v787
      %v847 = vpop.f32.mrf.mxu0
      %v848 = vadd.f32 %v763, %v847
      %v849 = vpop.f32.mrf.mxu0
      %v850 = vpop.f32.mrf.mxu0
      %v851 = vadd.f32 %v763, %v850
      %v852 = vpop.f32.mrf.mxu0
      %853 = vdwg.mxu0
      %v854 = vpack.c.bf16 %v827, %v824
      %v855 = vpack.c.bf16 %v835, %v832
      %v856 = vpack.c.bf16 %v843, %v840
      %v857 = vpack.c.bf16 %v851, %v848
      %v858 = vld [vmem:[%s6] sm:$0xff]
      %v859 = vld [vmem:[%s6 + $0x8] sm:$0xff]
      %v860 = vld [vmem:[%s6 + $0x10] sm:$0xff]
      %v861 = vld [vmem:[%s6 + $0x18] sm:$0xff]
      %v862 = vld [vmem:[%s6 + $0x20] sm:$0xff]
      %v863 = vld [vmem:[%s6 + $0x28] sm:$0xff]
      %v864 = vld [vmem:[%s6 + $0x30] sm:$0xff]
      %v865 = vld [vmem:[%s6 + $0x38] sm:$0xff]
      %870 = vrot.lane.b32.xlu0 %v854, 96
      %v871 = vpop.permute.xlu0 %870
      %872 = vrot.lane.b32.xlu0 %v855, 96
      %v873 = vpop.permute.xlu0 %872
      %874 = vrot.lane.b32.xlu0 %v856, 96
      %v875 = vpop.permute.xlu0 %874
      %876 = vrot.lane.b32.xlu0 %v857, 96
      %v877 = vpop.permute.xlu0 %876
      %vm878 = vcmask 130048
      %v880 = vsel %vm878, %v854, 0
      %v883 = vsel %vm878, %v855, 0
      %v886 = vsel %vm878, %v856, 0
      %v889 = vsel %vm878, %v857, 0
      %v892 = vsel %vm878, %v871, 0
      %v895 = vsel %vm878, %v873, 0
      %v898 = vsel %vm878, %v875, 0
      %v901 = vsel %vm878, %v877, 0
      %903 = vmatprep.subr.bf16.mxu0 0
      %904 = vmatpush1.bf16.xpose.msra.mxu0 0
      %905 = vmatprep.subr.bf16.mxu0 0
      %906 = vmatpush1.bf16.xpose.msra.mxu0 0
      %907 = vmatprep.subr.bf16.mxu0 0
      %908 = vmatpush1.bf16.xpose.msra.mxu0 0
      %909 = vmatprep.subr.bf16.mxu0 0
      %910 = vmatpush1.bf16.xpose.msra.mxu0 0
      %911 = vmatprep.subr.bf16.mxu0 0
      %912 = vmatpush1.bf16.xpose.msra.mxu0 %v901
      %913 = vmatprep.subr.bf16.mxu0 0
      %914 = vmatpush1.bf16.xpose.msra.mxu0 %v898
      %915 = vmatprep.subr.bf16.mxu0 0
      %916 = vmatpush1.bf16.xpose.msra.mxu0 %v895
      %917 = vmatprep.subr.bf16.mxu0 0
      %918 = vmatpush1.bf16.xpose.msra.mxu0 %v892
      %919 = vmatprep.subr.bf16.mxu0 0
      %920 = vmatpush2.bf16.xpose.msra.mxu0 0
      %921 = vmatprep.subr.bf16.mxu0 0
      %922 = vmatpush2.bf16.xpose.msra.mxu0 0
      %923 = vmatprep.subr.bf16.mxu0 0
      %924 = vmatpush2.bf16.xpose.msra.mxu0 0
      %925 = vmatprep.subr.bf16.mxu0 0
      %926 = vmatpush2.bf16.xpose.msra.mxu0 0
      %927 = vmatprep.subr.bf16.mxu0 0
      %928 = vmatpush2.bf16.xpose.msra.mxu0 0
      %929 = vmatprep.subr.bf16.mxu0 0
      %930 = vmatpush2.bf16.xpose.msra.mxu0 0
      %931 = vmatprep.subr.bf16.mxu0 0
      %932 = vmatpush2.bf16.xpose.msra.mxu0 0
      %933 = vmatprep.subr.bf16.mxu0 0
      %934 = vmatpush2.bf16.xpose.msra.mxu0 0
      %935 = vmatprep.mubr.bf16.mxu0 0
      %936 = vmatmul.mubr.bf16.gmra.mxu0 %v880
      %v937 = vpop.f32.mrf.mxu0
      %v938 = vadd.f32 %v858, %v937
      %v939 = vpop.f32.mrf.mxu0
      %v940 = vpop.f32.mrf.mxu0
      %v941 = vadd.f32 %v859, %v940
      %v942 = vpop.f32.mrf.mxu0
      %943 = vmatprep.mubr.bf16.mxu0 0
      %944 = vmatmul.mubr.bf16.gmra.mxu0 %v883
      %v945 = vpop.f32.mrf.mxu0
      %v946 = vadd.f32 %v860, %v945
      %v947 = vpop.f32.mrf.mxu0
      %v948 = vpop.f32.mrf.mxu0
      %v949 = vadd.f32 %v861, %v948
      %v950 = vpop.f32.mrf.mxu0
      %951 = vmatprep.mubr.bf16.mxu0 0
      %952 = vmatmul.mubr.bf16.gmra.mxu0 %v886
      %v953 = vpop.f32.mrf.mxu0
      %v954 = vadd.f32 %v862, %v953
      %v955 = vpop.f32.mrf.mxu0
      %v956 = vpop.f32.mrf.mxu0
      %v957 = vadd.f32 %v863, %v956
      %v958 = vpop.f32.mrf.mxu0
      %959 = vmatprep.mubr.bf16.mxu0 0
      %960 = vmatmul.mubr.bf16.gmra.mxu0 %v889
      %v961 = vpop.f32.mrf.mxu0
      %v962 = vadd.f32 %v864, %v961
      %v963 = vpop.f32.mrf.mxu0
      %v964 = vpop.f32.mrf.mxu0
      %v965 = vadd.f32 %v865, %v964
      %v966 = vpop.f32.mrf.mxu0
      %967 = vdwg.mxu0
      %vm968 = vcmask 523264
      %v969 = vsel %vm968, %v938, -inf
      %970 = vmax.xlane.f32.xlu0 %v969
      %v971 = vpop.xlane.xlu0 %970
      %v972 = vsel %vm968, %v941, -inf
      %973 = vmax.xlane.f32.xlu0 %v972
      %v974 = vpop.xlane.xlu0 %973
      %v975 = vsel %vm968, %v946, -inf
      %976 = vmax.xlane.f32.xlu0 %v975
      %v977 = vpop.xlane.xlu0 %976
      %v978 = vsel %vm968, %v949, -inf
      %979 = vmax.xlane.f32.xlu0 %v978
      %v980 = vpop.xlane.xlu0 %979
      %v981 = vsel %vm968, %v954, -inf
      %982 = vmax.xlane.f32.xlu0 %v981
      %v983 = vpop.xlane.xlu0 %982
      %v984 = vsel %vm968, %v957, -inf
      %985 = vmax.xlane.f32.xlu0 %v984
      %v986 = vpop.xlane.xlu0 %985
      %v987 = vsel %vm968, %v962, -inf
      %988 = vmax.xlane.f32.xlu0 %v987
      %v989 = vpop.xlane.xlu0 %988
      %v990 = vsel %vm968, %v965, -inf
      %991 = vmax.xlane.f32.xlu0 %v990
      %v992 = vpop.xlane.xlu0 %991
      %v993 = vsub.f32 %v938, %v971
      %v994 = vsub.f32 %v941, %v974
      %v995 = vsub.f32 %v946, %v977
      %v996 = vsub.f32 %v949, %v980
      %v997 = vsub.f32 %v954, %v983
      %v998 = vsub.f32 %v957, %v986
      %v999 = vsub.f32 %v962, %v989
      %v1000 = vsub.f32 %v965, %v992
      %v1001 = vmul.f32 %v993, 1.442695
      %v1002 = vpow.pop %v1001
      %v1003 = vmul.f32 %v994, 1.442695
      %v1004 = vpow.pop %v1003
      %v1005 = vmul.f32 %v995, 1.442695
      %v1006 = vpow.pop %v1005
      %v1007 = vmul.f32 %v996, 1.442695
      %v1008 = vpow.pop %v1007
      %v1009 = vmul.f32 %v997, 1.442695
      %v1010 = vpow.pop %v1009
      %v1011 = vmul.f32 %v998, 1.442695
      %v1012 = vpow.pop %v1011
      %v1013 = vmul.f32 %v999, 1.442695
      %v1014 = vpow.pop %v1013
      %v1015 = vmul.f32 %v1000, 1.442695
      %v1016 = vpow.pop %v1015
      %v1017 = vsel %vm968, %v1002, 0.0
      %1018 = vadd.xlane.f32.xlu0 %v1017
      %v1019 = vpop.xlane.xlu0 %1018
      %v1020 = vsel %vm968, %v1004, 0.0
      %1021 = vadd.xlane.f32.xlu0 %v1020
      %v1022 = vpop.xlane.xlu0 %1021
      %v1023 = vsel %vm968, %v1006, 0.0
      %1024 = vadd.xlane.f32.xlu0 %v1023
      %v1025 = vpop.xlane.xlu0 %1024
      %v1026 = vsel %vm968, %v1008, 0.0
      %1027 = vadd.xlane.f32.xlu0 %v1026
      %v1028 = vpop.xlane.xlu0 %1027
      %v1029 = vsel %vm968, %v1010, 0.0
      %1030 = vadd.xlane.f32.xlu0 %v1029
      %v1031 = vpop.xlane.xlu0 %1030
      %v1032 = vsel %vm968, %v1012, 0.0
      %1033 = vadd.xlane.f32.xlu0 %v1032
      %v1034 = vpop.xlane.xlu0 %1033
      %v1035 = vsel %vm968, %v1014, 0.0
      %1036 = vadd.xlane.f32.xlu0 %v1035
      %v1037 = vpop.xlane.xlu0 %1036
      %v1038 = vsel %vm968, %v1016, 0.0
      %1039 = vadd.xlane.f32.xlu0 %v1038
      %v1040 = vpop.xlane.xlu0 %1039
      %v1041 = vrcp.pop %v1019
      %v1042 = vrcp.pop %v1022
      %v1043 = vrcp.pop %v1025
      %v1044 = vrcp.pop %v1028
      %v1045 = vrcp.pop %v1031
      %v1046 = vrcp.pop %v1034
      %v1047 = vrcp.pop %v1037
      %v1048 = vrcp.pop %v1040
      %v1049 = vmul.f32 %v1002, %v1041
      %v1050 = vmul.f32 %v1004, %v1042
      %v1051 = vmul.f32 %v1006, %v1043
      %v1052 = vmul.f32 %v1008, %v1044
      %v1053 = vmul.f32 %v1010, %v1045
      %v1054 = vmul.f32 %v1012, %v1046
      %v1055 = vmul.f32 %v1014, %v1047
      %v1056 = vmul.f32 %v1016, %v1048
      %v1057 = vpack.c.bf16 %v1050, %v1049
      %v1058 = vpack.c.bf16 %v1052, %v1051
      %v1059 = vpack.c.bf16 %v1054, %v1053
      %v1060 = vpack.c.bf16 %v1056, %v1055
      %1061 = vrot.lane.b32.xlu0 %v854, 64
      %v1062 = vpop.permute.xlu0 %1061
      %1063 = vrot.lane.b32.xlu0 %v855, 64
      %v1064 = vpop.permute.xlu0 %1063
      %1065 = vrot.lane.b32.xlu0 %v856, 64
      %v1066 = vpop.permute.xlu0 %1065
      %1067 = vrot.lane.b32.xlu0 %v857, 64
      %v1068 = vpop.permute.xlu0 %1067
      %v1074 = vsel %vm968, %v1057, 0
      %v1077 = vsel %vm968, %v1058, 0
      %v1080 = vsel %vm968, %v1059, 0
      %v1083 = vsel %vm968, %v1060, 0
      %1085 = vmatprep.subr.bf16.mxu0 0
      %1086 = vmatpush1.bf16.msra.mxu0 0
      %1087 = vmatprep.subr.bf16.mxu0 0
      %1088 = vmatpush1.bf16.msra.mxu0 0
      %1089 = vmatprep.subr.bf16.mxu0 0
      %1090 = vmatpush1.bf16.msra.mxu0 0
      %1091 = vmatprep.subr.bf16.mxu0 0
      %1092 = vmatpush1.bf16.msra.mxu0 0
      %1093 = vmatprep.subr.bf16.mxu0 0
      %1094 = vmatpush1.bf16.msra.mxu0 %v1068
      %1095 = vmatprep.subr.bf16.mxu0 0
      %1096 = vmatpush1.bf16.msra.mxu0 %v1066
      %1097 = vmatprep.subr.bf16.mxu0 0
      %1098 = vmatpush1.bf16.msra.mxu0 %v1064
      %1099 = vmatprep.subr.bf16.mxu0 0
      %1100 = vmatpush1.bf16.msra.mxu0 %v1062
      %1101 = vmatprep.subr.bf16.mxu0 0
      %1102 = vmatpush2.bf16.msra.mxu0 0
      %1103 = vmatprep.subr.bf16.mxu0 0
      %1104 = vmatpush2.bf16.msra.mxu0 0
      %1105 = vmatprep.subr.bf16.mxu0 0
      %1106 = vmatpush2.bf16.msra.mxu0 0
      %1107 = vmatprep.subr.bf16.mxu0 0
      %1108 = vmatpush2.bf16.msra.mxu0 0
      %1109 = vmatprep.subr.bf16.mxu0 0
      %1110 = vmatpush2.bf16.msra.mxu0 0
      %1111 = vmatprep.subr.bf16.mxu0 0
      %1112 = vmatpush2.bf16.msra.mxu0 0
      %1113 = vmatprep.subr.bf16.mxu0 0
      %1114 = vmatpush2.bf16.msra.mxu0 0
      %1115 = vmatprep.subr.bf16.mxu0 0
      %1116 = vmatpush2.bf16.msra.mxu0 0
      %1117 = vmatprep.mubr.bf16.mxu0 0
      %1118 = vmatmul.mubr.bf16.gmra.mxu0 %v1074
      %v1119 = vpop.f32.mrf.mxu0
      %v1120 = vadd.f32 0.0, %v1119
      %v1121 = vpop.f32.mrf.mxu0
      %v1122 = vpop.f32.mrf.mxu0
      %v1123 = vadd.f32 0.0, %v1122
      %v1124 = vpop.f32.mrf.mxu0
      %1125 = vmatprep.mubr.bf16.mxu0 0
      %1126 = vmatmul.mubr.bf16.gmra.mxu0 %v1077
      %v1127 = vpop.f32.mrf.mxu0
      %v1128 = vadd.f32 0.0, %v1127
      %v1129 = vpop.f32.mrf.mxu0
      %v1130 = vpop.f32.mrf.mxu0
      %v1131 = vadd.f32 0.0, %v1130
      %v1132 = vpop.f32.mrf.mxu0
      %1133 = vmatprep.mubr.bf16.mxu0 0
      %1134 = vmatmul.mubr.bf16.gmra.mxu0 %v1080
      %v1135 = vpop.f32.mrf.mxu0
      %v1136 = vadd.f32 0.0, %v1135
      %v1137 = vpop.f32.mrf.mxu0
      %v1138 = vpop.f32.mrf.mxu0
      %v1139 = vadd.f32 0.0, %v1138
      %v1140 = vpop.f32.mrf.mxu0
      %1141 = vmatprep.mubr.bf16.mxu0 0
      %1142 = vmatmul.mubr.bf16.gmra.mxu0 %v1083
      %v1143 = vpop.f32.mrf.mxu0
      %v1144 = vadd.f32 0.0, %v1143
      %v1145 = vpop.f32.mrf.mxu0
      %v1146 = vpop.f32.mrf.mxu0
      %v1147 = vadd.f32 0.0, %v1146
      %v1148 = vpop.f32.mrf.mxu0
      %1149 = vdwg.mxu0
      %1150 = vst.msk [vmem:[#allocation2] sm:$0xff] %vm878, %v1120
      %1151 = vst.msk [vmem:[#allocation2 + $0x8] sm:$0xff] %vm878, %v1123
      %1152 = vst.msk [vmem:[#allocation2 + $0x10] sm:$0xff] %vm878, %v1128
      %1153 = vst.msk [vmem:[#allocation2 + $0x18] sm:$0xff] %vm878, %v1131
      %1154 = vst.msk [vmem:[#allocation2 + $0x20] sm:$0xff] %vm878, %v1136
      %1155 = vst.msk [vmem:[#allocation2 + $0x28] sm:$0xff] %vm878, %v1139
      %1156 = vst.msk [vmem:[#allocation2 + $0x30] sm:$0xff] %vm878, %v1144
      %1157 = vst.msk [vmem:[#allocation2 + $0x38] sm:$0xff] %vm878, %v1147
      %s1158 = scalar_lea.vmem %s6, 64
      %v1159 = vld [vmem:[%s1158] sm:$0xff]
      %v1160 = vld [vmem:[%s1158 + $0x8] sm:$0xff]
      %v1161 = vld [vmem:[%s1158 + $0x10] sm:$0xff]
      %v1162 = vld [vmem:[%s1158 + $0x18] sm:$0xff]
      %v1163 = vld [vmem:[%s1158 + $0x20] sm:$0xff]
      %v1164 = vld [vmem:[%s1158 + $0x28] sm:$0xff]
      %v1165 = vld [vmem:[%s1158 + $0x30] sm:$0xff]
      %v1166 = vld [vmem:[%s1158 + $0x38] sm:$0xff]
      %1167 = vrot.lane.b32.xlu0 %v854, 112
      %v1168 = vpop.permute.xlu0 %1167
      %1169 = vrot.lane.b32.xlu0 %v855, 112
      %v1170 = vpop.permute.xlu0 %1169
      %1171 = vrot.lane.b32.xlu0 %v856, 112
      %v1172 = vpop.permute.xlu0 %1171
      %1173 = vrot.lane.b32.xlu0 %v857, 112
      %v1174 = vpop.permute.xlu0 %1173
      %1175 = vrot.lane.b32.xlu0 %v854, 80
      %v1176 = vpop.permute.xlu0 %1175
      %1177 = vrot.lane.b32.xlu0 %v855, 80
      %v1178 = vpop.permute.xlu0 %1177
      %1179 = vrot.lane.b32.xlu0 %v856, 80
      %v1180 = vpop.permute.xlu0 %1179
      %1181 = vrot.lane.b32.xlu0 %v857, 80
      %v1182 = vpop.permute.xlu0 %1181
      %v1184 = vsel %vm878, %v1168, 0
      %v1187 = vsel %vm878, %v1170, 0
      %v1190 = vsel %vm878, %v1172, 0
      %v1193 = vsel %vm878, %v1174, 0
      %v1196 = vsel %vm878, %v1176, 0
      %v1199 = vsel %vm878, %v1178, 0
      %v1202 = vsel %vm878, %v1180, 0
      %v1205 = vsel %vm878, %v1182, 0
      %1207 = vmatprep.subr.bf16.mxu0 0
      %1208 = vmatpush1.bf16.xpose.msra.mxu0 0
      %1209 = vmatprep.subr.bf16.mxu0 0
      %1210 = vmatpush1.bf16.xpose.msra.mxu0 0
      %1211 = vmatprep.subr.bf16.mxu0 0
      %1212 = vmatpush1.bf16.xpose.msra.mxu0 0
      %1213 = vmatprep.subr.bf16.mxu0 0
      %1214 = vmatpush1.bf16.xpose.msra.mxu0 0
      %1215 = vmatprep.subr.bf16.mxu0 0
      %1216 = vmatpush1.bf16.xpose.msra.mxu0 %v1205
      %1217 = vmatprep.subr.bf16.mxu0 0
      %1218 = vmatpush1.bf16.xpose.msra.mxu0 %v1202
      %1219 = vmatprep.subr.bf16.mxu0 0
      %1220 = vmatpush1.bf16.xpose.msra.mxu0 %v1199
      %1221 = vmatprep.subr.bf16.mxu0 0
      %1222 = vmatpush1.bf16.xpose.msra.mxu0 %v1196
      %1223 = vmatprep.subr.bf16.mxu0 0
      %1224 = vmatpush2.bf16.xpose.msra.mxu0 0
      %1225 = vmatprep.subr.bf16.mxu0 0
      %1226 = vmatpush2.bf16.xpose.msra.mxu0 0
      %1227 = vmatprep.subr.bf16.mxu0 0
      %1228 = vmatpush2.bf16.xpose.msra.mxu0 0
      %1229 = vmatprep.subr.bf16.mxu0 0
      %1230 = vmatpush2.bf16.xpose.msra.mxu0 0
      %1231 = vmatprep.subr.bf16.mxu0 0
      %1232 = vmatpush2.bf16.xpose.msra.mxu0 0
      %1233 = vmatprep.subr.bf16.mxu0 0
      %1234 = vmatpush2.bf16.xpose.msra.mxu0 0
      %1235 = vmatprep.subr.bf16.mxu0 0
      %1236 = vmatpush2.bf16.xpose.msra.mxu0 0
      %1237 = vmatprep.subr.bf16.mxu0 0
      %1238 = vmatpush2.bf16.xpose.msra.mxu0 0
      %1239 = vmatprep.mubr.bf16.mxu0 0
      %1240 = vmatmul.mubr.bf16.gmra.mxu0 %v1184
      %v1241 = vpop.f32.mrf.mxu0
      %v1242 = vadd.f32 %v1159, %v1241
      %v1243 = vpop.f32.mrf.mxu0
      %v1244 = vpop.f32.mrf.mxu0
      %v1245 = vadd.f32 %v1160, %v1244
      %v1246 = vpop.f32.mrf.mxu0
      %1247 = vmatprep.mubr.bf16.mxu0 0
      %1248 = vmatmul.mubr.bf16.gmra.mxu0 %v1187
      %v1249 = vpop.f32.mrf.mxu0
      %v1250 = vadd.f32 %v1161, %v1249
      %v1251 = vpop.f32.mrf.mxu0
      %v1252 = vpop.f32.mrf.mxu0
      %v1253 = vadd.f32 %v1162, %v1252
      %v1254 = vpop.f32.mrf.mxu0
      %1255 = vmatprep.mubr.bf16.mxu0 0
      %1256 = vmatmul.mubr.bf16.gmra.mxu0 %v1190
      %v1257 = vpop.f32.mrf.mxu0
      %v1258 = vadd.f32 %v1163, %v1257
      %v1259 = vpop.f32.mrf.mxu0
      %v1260 = vpop.f32.mrf.mxu0
      %v1261 = vadd.f32 %v1164, %v1260
      %v1262 = vpop.f32.mrf.mxu0
      %1263 = vmatprep.mubr.bf16.mxu0 0
      %1264 = vmatmul.mubr.bf16.gmra.mxu0 %v1193
      %v1265 = vpop.f32.mrf.mxu0
      %v1266 = vadd.f32 %v1165, %v1265
      %v1267 = vpop.f32.mrf.mxu0
      %v1268 = vpop.f32.mrf.mxu0
      %v1269 = vadd.f32 %v1166, %v1268
      %v1270 = vpop.f32.mrf.mxu0
      %1271 = vdwg.mxu0
      %v1272 = vsel %vm968, %v1242, -inf
      %1273 = vmax.xlane.f32.xlu0 %v1272
      %v1274 = vpop.xlane.xlu0 %1273
      %v1275 = vsel %vm968, %v1245, -inf
      %1276 = vmax.xlane.f32.xlu0 %v1275
      %v1277 = vpop.xlane.xlu0 %1276
      %v1278 = vsel %vm968, %v1250, -inf
      %1279 = vmax.xlane.f32.xlu0 %v1278
      %v1280 = vpop.xlane.xlu0 %1279
      %v1281 = vsel %vm968, %v1253, -inf
      %1282 = vmax.xlane.f32.xlu0 %v1281
      %v1283 = vpop.xlane.xlu0 %1282
      %v1284 = vsel %vm968, %v1258, -inf
      %1285 = vmax.xlane.f32.xlu0 %v1284
      %v1286 = vpop.xlane.xlu0 %1285
      %v1287 = vsel %vm968, %v1261, -inf
      %1288 = vmax.xlane.f32.xlu0 %v1287
      %v1289 = vpop.xlane.xlu0 %1288
      %v1290 = vsel %vm968, %v1266, -inf
      %1291 = vmax.xlane.f32.xlu0 %v1290
      %v1292 = vpop.xlane.xlu0 %1291
      %v1293 = vsel %vm968, %v1269, -inf
      %1294 = vmax.xlane.f32.xlu0 %v1293
      %v1295 = vpop.xlane.xlu0 %1294
      %v1296 = vsub.f32 %v1242, %v1274
      %v1297 = vsub.f32 %v1245, %v1277
      %v1298 = vsub.f32 %v1250, %v1280
      %v1299 = vsub.f32 %v1253, %v1283
      %v1300 = vsub.f32 %v1258, %v1286
      %v1301 = vsub.f32 %v1261, %v1289
      %v1302 = vsub.f32 %v1266, %v1292
      %v1303 = vsub.f32 %v1269, %v1295
      %v1304 = vmul.f32 %v1296, 1.442695
      %v1305 = vpow.pop %v1304
      %v1306 = vmul.f32 %v1297, 1.442695
      %v1307 = vpow.pop %v1306
      %v1308 = vmul.f32 %v1298, 1.442695
      %v1309 = vpow.pop %v1308
      %v1310 = vmul.f32 %v1299, 1.442695
      %v1311 = vpow.pop %v1310
      %v1312 = vmul.f32 %v1300, 1.442695
      %v1313 = vpow.pop %v1312
      %v1314 = vmul.f32 %v1301, 1.442695
      %v1315 = vpow.pop %v1314
      %v1316 = vmul.f32 %v1302, 1.442695
      %v1317 = vpow.pop %v1316
      %v1318 = vmul.f32 %v1303, 1.442695
      %v1319 = vpow.pop %v1318
      %v1320 = vsel %vm968, %v1305, 0.0
      %1321 = vadd.xlane.f32.xlu0 %v1320
      %v1322 = vpop.xlane.xlu0 %1321
      %v1323 = vsel %vm968, %v1307, 0.0
      %1324 = vadd.xlane.f32.xlu0 %v1323
      %v1325 = vpop.xlane.xlu0 %1324
      %v1326 = vsel %vm968, %v1309, 0.0
      %1327 = vadd.xlane.f32.xlu0 %v1326
      %v1328 = vpop.xlane.xlu0 %1327
      %v1329 = vsel %vm968, %v1311, 0.0
      %1330 = vadd.xlane.f32.xlu0 %v1329
      %v1331 = vpop.xlane.xlu0 %1330
      %v1332 = vsel %vm968, %v1313, 0.0
      %1333 = vadd.xlane.f32.xlu0 %v1332
      %v1334 = vpop.xlane.xlu0 %1333
      %v1335 = vsel %vm968, %v1315, 0.0
      %1336 = vadd.xlane.f32.xlu0 %v1335
      %v1337 = vpop.xlane.xlu0 %1336
      %v1338 = vsel %vm968, %v1317, 0.0
      %1339 = vadd.xlane.f32.xlu0 %v1338
      %v1340 = vpop.xlane.xlu0 %1339
      %v1341 = vsel %vm968, %v1319, 0.0
      %1342 = vadd.xlane.f32.xlu0 %v1341
      %v1343 = vpop.xlane.xlu0 %1342
      %v1344 = vrcp.pop %v1322
      %v1345 = vrcp.pop %v1325
      %v1346 = vrcp.pop %v1328
      %v1347 = vrcp.pop %v1331
      %v1348 = vrcp.pop %v1334
      %v1349 = vrcp.pop %v1337
      %v1350 = vrcp.pop %v1340
      %v1351 = vrcp.pop %v1343
      %v1352 = vmul.f32 %v1305, %v1344
      %v1353 = vmul.f32 %v1307, %v1345
      %v1354 = vmul.f32 %v1309, %v1346
      %v1355 = vmul.f32 %v1311, %v1347
      %v1356 = vmul.f32 %v1313, %v1348
      %v1357 = vmul.f32 %v1315, %v1349
      %v1358 = vmul.f32 %v1317, %v1350
      %v1359 = vmul.f32 %v1319, %v1351
      %v1360 = vpack.c.bf16 %v1353, %v1352
      %v1361 = vpack.c.bf16 %v1355, %v1354
      %v1362 = vpack.c.bf16 %v1357, %v1356
      %v1363 = vpack.c.bf16 %v1359, %v1358
      %1364 = vrot.lane.b32.xlu0 %v854, 48
      %v1365 = vpop.permute.xlu0 %1364
      %1366 = vrot.lane.b32.xlu0 %v855, 48
      %v1367 = vpop.permute.xlu0 %1366
      %1368 = vrot.lane.b32.xlu0 %v856, 48
      %v1369 = vpop.permute.xlu0 %1368
      %1370 = vrot.lane.b32.xlu0 %v857, 48
      %v1371 = vpop.permute.xlu0 %1370
      %v1377 = vsel %vm968, %v1360, 0
      %v1380 = vsel %vm968, %v1361, 0
      %v1383 = vsel %vm968, %v1362, 0
      %v1386 = vsel %vm968, %v1363, 0
      %1388 = vmatprep.subr.bf16.mxu0 0
      %1389 = vmatpush1.bf16.msra.mxu0 0
      %1390 = vmatprep.subr.bf16.mxu0 0
      %1391 = vmatpush1.bf16.msra.mxu0 0
      %1392 = vmatprep.subr.bf16.mxu0 0
      %1393 = vmatpush1.bf16.msra.mxu0 0
      %1394 = vmatprep.subr.bf16.mxu0 0
      %1395 = vmatpush1.bf16.msra.mxu0 0
      %1396 = vmatprep.subr.bf16.mxu0 0
      %1397 = vmatpush1.bf16.msra.mxu0 %v1371
      %1398 = vmatprep.subr.bf16.mxu0 0
      %1399 = vmatpush1.bf16.msra.mxu0 %v1369
      %1400 = vmatprep.subr.bf16.mxu0 0
      %1401 = vmatpush1.bf16.msra.mxu0 %v1367
      %1402 = vmatprep.subr.bf16.mxu0 0
      %1403 = vmatpush1.bf16.msra.mxu0 %v1365
      %1404 = vmatprep.subr.bf16.mxu0 0
      %1405 = vmatpush2.bf16.msra.mxu0 0
      %1406 = vmatprep.subr.bf16.mxu0 0
      %1407 = vmatpush2.bf16.msra.mxu0 0
      %1408 = vmatprep.subr.bf16.mxu0 0
      %1409 = vmatpush2.bf16.msra.mxu0 0
      %1410 = vmatprep.subr.bf16.mxu0 0
      %1411 = vmatpush2.bf16.msra.mxu0 0
      %1412 = vmatprep.subr.bf16.mxu0 0
      %1413 = vmatpush2.bf16.msra.mxu0 0
      %1414 = vmatprep.subr.bf16.mxu0 0
      %1415 = vmatpush2.bf16.msra.mxu0 0
      %1416 = vmatprep.subr.bf16.mxu0 0
      %1417 = vmatpush2.bf16.msra.mxu0 0
      %1418 = vmatprep.subr.bf16.mxu0 0
      %1419 = vmatpush2.bf16.msra.mxu0 0
      %1420 = vmatprep.mubr.bf16.mxu0 0
      %1421 = vmatmul.mubr.bf16.gmra.mxu0 %v1377
      %v1422 = vpop.f32.mrf.mxu0
      %v1423 = vadd.f32 0.0, %v1422
      %v1424 = vpop.f32.mrf.mxu0
      %v1425 = vpop.f32.mrf.mxu0
      %v1426 = vadd.f32 0.0, %v1425
      %v1427 = vpop.f32.mrf.mxu0
      %1428 = vmatprep.mubr.bf16.mxu0 0
      %1429 = vmatmul.mubr.bf16.gmra.mxu0 %v1380
      %v1430 = vpop.f32.mrf.mxu0
      %v1431 = vadd.f32 0.0, %v1430
      %v1432 = vpop.f32.mrf.mxu0
      %v1433 = vpop.f32.mrf.mxu0
      %v1434 = vadd.f32 0.0, %v1433
      %v1435 = vpop.f32.mrf.mxu0
      %1436 = vmatprep.mubr.bf16.mxu0 0
      %1437 = vmatmul.mubr.bf16.gmra.mxu0 %v1383
      %v1438 = vpop.f32.mrf.mxu0
      %v1439 = vadd.f32 0.0, %v1438
      %v1440 = vpop.f32.mrf.mxu0
      %v1441 = vpop.f32.mrf.mxu0
      %v1442 = vadd.f32 0.0, %v1441
      %v1443 = vpop.f32.mrf.mxu0
      %1444 = vmatprep.mubr.bf16.mxu0 0
      %1445 = vmatmul.mubr.bf16.gmra.mxu0 %v1386
      %v1446 = vpop.f32.mrf.mxu0
      %v1447 = vadd.f32 0.0, %v1446
      %v1448 = vpop.f32.mrf.mxu0
      %v1449 = vpop.f32.mrf.mxu0
      %v1450 = vadd.f32 0.0, %v1449
      %v1451 = vpop.f32.mrf.mxu0
      %1452 = vdwg.mxu0
      %1461 = vrot.lane.b32.xlu0 %v1423, 16
      %v1462 = vpop.permute.xlu0 %1461
      %1463 = vrot.lane.b32.xlu0 %v1426, 16
      %v1464 = vpop.permute.xlu0 %1463
      %1465 = vrot.lane.b32.xlu0 %v1431, 16
      %v1466 = vpop.permute.xlu0 %1465
      %1467 = vrot.lane.b32.xlu0 %v1434, 16
      %v1468 = vpop.permute.xlu0 %1467
      %1469 = vrot.lane.b32.xlu0 %v1439, 16
      %v1470 = vpop.permute.xlu0 %1469
      %1471 = vrot.lane.b32.xlu0 %v1442, 16
      %v1472 = vpop.permute.xlu0 %1471
      %1473 = vrot.lane.b32.xlu0 %v1447, 16
      %v1474 = vpop.permute.xlu0 %1473
      %1475 = vrot.lane.b32.xlu0 %v1450, 16
      %v1476 = vpop.permute.xlu0 %1475
      %vm1485 = vcmask 261248
      %1486 = vst.msk [vmem:[#allocation2] sm:$0xff] %vm1485, %v1462
      %1487 = vst.msk [vmem:[#allocation2 + $0x8] sm:$0xff] %vm1485, %v1464
      %1488 = vst.msk [vmem:[#allocation2 + $0x10] sm:$0xff] %vm1485, %v1466
      %1489 = vst.msk [vmem:[#allocation2 + $0x18] sm:$0xff] %vm1485, %v1468
      %1490 = vst.msk [vmem:[#allocation2 + $0x20] sm:$0xff] %vm1485, %v1470
      %1491 = vst.msk [vmem:[#allocation2 + $0x28] sm:$0xff] %vm1485, %v1472
      %1492 = vst.msk [vmem:[#allocation2 + $0x30] sm:$0xff] %vm1485, %v1474
      %1493 = vst.msk [vmem:[#allocation2 + $0x38] sm:$0xff] %vm1485, %v1476
      %v1494 = vld [vmem:[#allocation2] sm:$0xff]
      %v1495 = vld [vmem:[#allocation2 + $0x8] sm:$0xff]
      %v1496 = vld [vmem:[#allocation2 + $0x10] sm:$0xff]
      %v1497 = vld [vmem:[#allocation2 + $0x18] sm:$0xff]
      %v1498 = vld [vmem:[#allocation2 + $0x20] sm:$0xff]
      %v1499 = vld [vmem:[#allocation2 + $0x28] sm:$0xff]
      %v1500 = vld [vmem:[#allocation2 + $0x30] sm:$0xff]
      %v1501 = vld [vmem:[#allocation2 + $0x38] sm:$0xff]
      %v1502 = vpack.c.bf16 %v1495, %v1494
      %v1503 = vpack.c.bf16 %v1497, %v1496
      %v1504 = vpack.c.bf16 %v1499, %v1498
      %v1505 = vpack.c.bf16 %v1501, %v1500
      %v1506 = vld [vmem:[%s7] sm:$0xf]
      %v1507 = vld [vmem:[%s7 + $0x4] sm:$0xf]
      %v1508 = vld [vmem:[%s7 + $0x8] sm:$0xf]
      %v1509 = vld [vmem:[%s7 + $0xc] sm:$0xf]
      %v1510 = vld [vmem:[%s8] sm:$0x1]
      %v1512 = vlaneseq
      %v1513 = vshrl.u32 %v1512, 7
      %v1514 = vsub.s32 0, %v1513
      %v1515 = vrot.slane %v1510, %v1514
      %v1521 = vunpack.c.l.b16 %v1506
      %v1522 = vunpack.c.l.b16 %v1507
      %v1523 = vunpack.c.l.b16 %v1508
      %v1524 = vunpack.c.l.b16 %v1509
      %v1525 = vpack.c.b16 %v1522, %v1521
      %v1526 = vpack.c.b16 %v1524, %v1523
      %v1530 = vsel %vm560, %v1502, 0
      %v1533 = vsel %vm560, %v1503, 0
      %v1536 = vsel %vm560, %v1504, 0
      %v1539 = vsel %vm560, %v1505, 0
      %1541 = vmatprep.subr.bf16.mxu0 0
      %1542 = vmatpush1.bf16.msra.mxu0 0
      %1543 = vmatprep.subr.bf16.mxu0 0
      %1544 = vmatpush1.bf16.msra.mxu0 0
      %1545 = vmatprep.subr.bf16.mxu0 0
      %1546 = vmatpush1.bf16.msra.mxu0 0
      %1547 = vmatprep.subr.bf16.mxu0 0
      %1548 = vmatpush1.bf16.msra.mxu0 0
      %1549 = vmatprep.subr.bf16.mxu0 0
      %1550 = vmatpush1.bf16.msra.mxu0 0
      %1551 = vmatprep.subr.bf16.mxu0 0
      %1552 = vmatpush1.bf16.msra.mxu0 0
      %1553 = vmatprep.subr.bf16.mxu0 0
      %1554 = vmatpush1.bf16.msra.mxu0 %v1526
      %1555 = vmatprep.subr.bf16.mxu0 0
      %1556 = vmatpush1.bf16.msra.mxu0 %v1525
      %1557 = vmatprep.subr.bf16.mxu0 0
      %1558 = vmatpush2.bf16.msra.mxu0 0
      %1559 = vmatprep.subr.bf16.mxu0 0
      %1560 = vmatpush2.bf16.msra.mxu0 0
      %1561 = vmatprep.subr.bf16.mxu0 0
      %1562 = vmatpush2.bf16.msra.mxu0 0
      %1563 = vmatprep.subr.bf16.mxu0 0
      %1564 = vmatpush2.bf16.msra.mxu0 0
      %1565 = vmatprep.subr.bf16.mxu0 0
      %1566 = vmatpush2.bf16.msra.mxu0 0
      %1567 = vmatprep.subr.bf16.mxu0 0
      %1568 = vmatpush2.bf16.msra.mxu0 0
      %1569 = vmatprep.subr.bf16.mxu0 0
      %1570 = vmatpush2.bf16.msra.mxu0 0
      %1571 = vmatprep.subr.bf16.mxu0 0
      %1572 = vmatpush2.bf16.msra.mxu0 0
      %1573 = vmatprep.mubr.bf16.mxu0 0
      %1574 = vmatmul.mubr.bf16.gmra.mxu0 %v1530
      %v1575 = vpop.f32.mrf.mxu0
      %v1576 = vadd.f32 %v1515, %v1575
      %v1577 = vpop.f32.mrf.mxu0
      %v1578 = vpop.f32.mrf.mxu0
      %v1579 = vadd.f32 %v1515, %v1578
      %v1580 = vpop.f32.mrf.mxu0
      %1581 = vmatprep.mubr.bf16.mxu0 0
      %1582 = vmatmul.mubr.bf16.gmra.mxu0 %v1533
      %v1583 = vpop.f32.mrf.mxu0
      %v1584 = vadd.f32 %v1515, %v1583
      %v1585 = vpop.f32.mrf.mxu0
      %v1586 = vpop.f32.mrf.mxu0
      %v1587 = vadd.f32 %v1515, %v1586
      %v1588 = vpop.f32.mrf.mxu0
      %1589 = vmatprep.mubr.bf16.mxu0 0
      %1590 = vmatmul.mubr.bf16.gmra.mxu0 %v1536
      %v1591 = vpop.f32.mrf.mxu0
      %v1592 = vadd.f32 %v1515, %v1591
      %v1593 = vpop.f32.mrf.mxu0
      %v1594 = vpop.f32.mrf.mxu0
      %v1595 = vadd.f32 %v1515, %v1594
      %v1596 = vpop.f32.mrf.mxu0
      %1597 = vmatprep.mubr.bf16.mxu0 0
      %1598 = vmatmul.mubr.bf16.gmra.mxu0 %v1539
      %v1599 = vpop.f32.mrf.mxu0
      %v1600 = vadd.f32 %v1515, %v1599
      %v1601 = vpop.f32.mrf.mxu0
      %v1602 = vpop.f32.mrf.mxu0
      %v1603 = vadd.f32 %v1515, %v1602
      %v1604 = vpop.f32.mrf.mxu0
      %1605 = vdwg.mxu0
      %v1606 = vld [vmem:[%s9] sm:$0x1]
      %v1608 = vlaneseq
      %v1609 = vshrl.u32 %v1608, 7
      %v1610 = vsub.s32 0, %v1609
      %v1611 = vrot.slane %v1606, %v1610
      %v1613 = vmul.f32 %v1611, %v1576
      %v1614 = vmul.f32 %v1611, %v1579
      %v1615 = vmul.f32 %v1611, %v1584
      %v1616 = vmul.f32 %v1611, %v1587
      %v1617 = vmul.f32 %v1611, %v1592
      %v1618 = vmul.f32 %v1611, %v1595
      %v1619 = vmul.f32 %v1611, %v1600
      %v1620 = vmul.f32 %v1611, %v1603
      %v1621 = vadd.f32 %v550, %v1613
      %v1622 = vadd.f32 %v551, %v1614
      %v1623 = vadd.f32 %v552, %v1615
      %v1624 = vadd.f32 %v553, %v1616
      %v1625 = vadd.f32 %v554, %v1617
      %v1626 = vadd.f32 %v555, %v1618
      %v1627 = vadd.f32 %v556, %v1619
      %v1628 = vadd.f32 %v557, %v1620
      %v1629 = vld [vmem:[%s11] sm:$0x1]
      %v1630 = vld [vmem:[%s12] sm:$0x1]
      %v1631 = vsel %vm560, %v1621, 0.0
      %1632 = vadd.xlane.f32.xlu0 %v1631
      %v1633 = vpop.xlane.xlu0 %1632
      %v1634 = vsel %vm560, %v1622, 0.0
      %1635 = vadd.xlane.f32.xlu0 %v1634
      %v1636 = vpop.xlane.xlu0 %1635
      %v1637 = vsel %vm560, %v1623, 0.0
      %1638 = vadd.xlane.f32.xlu0 %v1637
      %v1639 = vpop.xlane.xlu0 %1638
      %v1640 = vsel %vm560, %v1624, 0.0
      %1641 = vadd.xlane.f32.xlu0 %v1640
      %v1642 = vpop.xlane.xlu0 %1641
      %v1643 = vsel %vm560, %v1625, 0.0
      %1644 = vadd.xlane.f32.xlu0 %v1643
      %v1645 = vpop.xlane.xlu0 %1644
      %v1646 = vsel %vm560, %v1626, 0.0
      %1647 = vadd.xlane.f32.xlu0 %v1646
      %v1648 = vpop.xlane.xlu0 %1647
      %v1649 = vsel %vm560, %v1627, 0.0
      %1650 = vadd.xlane.f32.xlu0 %v1649
      %v1651 = vpop.xlane.xlu0 %1650
      %v1652 = vsel %vm560, %v1628, 0.0
      %1653 = vadd.xlane.f32.xlu0 %v1652
      %v1654 = vpop.xlane.xlu0 %1653
      %v1655 = vmul.f32 %v1633, %v585
      %v1656 = vmul.f32 %v1636, %v585
      %v1657 = vmul.f32 %v1639, %v585
      %v1658 = vmul.f32 %v1642, %v585
      %v1659 = vmul.f32 %v1645, %v585
      %v1660 = vmul.f32 %v1648, %v585
      %v1661 = vmul.f32 %v1651, %v585
      %v1662 = vmul.f32 %v1654, %v585
      %v1663 = vsub.f32 %v1621, %v1655
      %v1664 = vsub.f32 %v1622, %v1656
      %v1665 = vsub.f32 %v1623, %v1657
      %v1666 = vsub.f32 %v1624, %v1658
      %v1667 = vsub.f32 %v1625, %v1659
      %v1668 = vsub.f32 %v1626, %v1660
      %v1669 = vsub.f32 %v1627, %v1661
      %v1670 = vsub.f32 %v1628, %v1662
      %v1671 = vmul.f32 %v1663, %v1663
      %v1672 = vmul.f32 %v1664, %v1664
      %v1673 = vmul.f32 %v1665, %v1665
      %v1674 = vmul.f32 %v1666, %v1666
      %v1675 = vmul.f32 %v1667, %v1667
      %v1676 = vmul.f32 %v1668, %v1668
      %v1677 = vmul.f32 %v1669, %v1669
      %v1678 = vmul.f32 %v1670, %v1670
      %v1679 = vsel %vm560, %v1671, 0.0
      %1680 = vadd.xlane.f32.xlu0 %v1679
      %v1681 = vpop.xlane.xlu0 %1680
      %v1682 = vsel %vm560, %v1672, 0.0
      %1683 = vadd.xlane.f32.xlu0 %v1682
      %v1684 = vpop.xlane.xlu0 %1683
      %v1685 = vsel %vm560, %v1673, 0.0
      %1686 = vadd.xlane.f32.xlu0 %v1685
      %v1687 = vpop.xlane.xlu0 %1686
      %v1688 = vsel %vm560, %v1674, 0.0
      %1689 = vadd.xlane.f32.xlu0 %v1688
      %v1690 = vpop.xlane.xlu0 %1689
      %v1691 = vsel %vm560, %v1675, 0.0
      %1692 = vadd.xlane.f32.xlu0 %v1691
      %v1693 = vpop.xlane.xlu0 %1692
      %v1694 = vsel %vm560, %v1676, 0.0
      %1695 = vadd.xlane.f32.xlu0 %v1694
      %v1696 = vpop.xlane.xlu0 %1695
      %v1697 = vsel %vm560, %v1677, 0.0
      %1698 = vadd.xlane.f32.xlu0 %v1697
      %v1699 = vpop.xlane.xlu0 %1698
      %v1700 = vsel %vm560, %v1678, 0.0
      %1701 = vadd.xlane.f32.xlu0 %v1700
      %v1702 = vpop.xlane.xlu0 %1701
      %v1703 = vmul.f32 %v1681, %v585
      %v1704 = vmul.f32 %v1684, %v585
      %v1705 = vmul.f32 %v1687, %v585
      %v1706 = vmul.f32 %v1690, %v585
      %v1707 = vmul.f32 %v1693, %v585
      %v1708 = vmul.f32 %v1696, %v585
      %v1709 = vmul.f32 %v1699, %v585
      %v1710 = vmul.f32 %v1702, %v585
      %v1711 = vadd.f32 %v1703, 1e-05
      %v1712 = vadd.f32 %v1704, 1e-05
      %v1713 = vadd.f32 %v1705, 1e-05
      %v1714 = vadd.f32 %v1706, 1e-05
      %v1715 = vadd.f32 %v1707, 1e-05
      %v1716 = vadd.f32 %v1708, 1e-05
      %v1717 = vadd.f32 %v1709, 1e-05
      %v1718 = vadd.f32 %v1710, 1e-05
      %v1719 = vrsqrt.pop %v1711
      %v1720 = vrsqrt.pop %v1712
      %v1721 = vrsqrt.pop %v1713
      %v1722 = vrsqrt.pop %v1714
      %v1723 = vrsqrt.pop %v1715
      %v1724 = vrsqrt.pop %v1716
      %v1725 = vrsqrt.pop %v1717
      %v1726 = vrsqrt.pop %v1718
      %v1727 = vmul.f32 %v1663, %v1719
      %v1728 = vmul.f32 %v1664, %v1720
      %v1729 = vmul.f32 %v1665, %v1721
      %v1730 = vmul.f32 %v1666, %v1722
      %v1731 = vmul.f32 %v1667, %v1723
      %v1732 = vmul.f32 %v1668, %v1724
      %v1733 = vmul.f32 %v1669, %v1725
      %v1734 = vmul.f32 %v1670, %v1726
      %v1736 = vlaneseq
      %v1737 = vshrl.u32 %v1736, 7
      %v1738 = vsub.s32 0, %v1737
      %v1739 = vrot.slane %v1629, %v1738
      %v1741 = vmul.f32 %v1727, %v1739
      %v1742 = vmul.f32 %v1728, %v1739
      %v1743 = vmul.f32 %v1729, %v1739
      %v1744 = vmul.f32 %v1730, %v1739
      %v1745 = vmul.f32 %v1731, %v1739
      %v1746 = vmul.f32 %v1732, %v1739
      %v1747 = vmul.f32 %v1733, %v1739
      %v1748 = vmul.f32 %v1734, %v1739
      %v1750 = vlaneseq
      %v1751 = vshrl.u32 %v1750, 7
      %v1752 = vsub.s32 0, %v1751
      %v1753 = vrot.slane %v1630, %v1752
      %v1755 = vadd.f32 %v1741, %v1753
      %v1756 = vadd.f32 %v1742, %v1753
      %v1757 = vadd.f32 %v1743, %v1753
      %v1758 = vadd.f32 %v1744, %v1753
      %v1759 = vadd.f32 %v1745, %v1753
      %v1760 = vadd.f32 %v1746, %v1753
      %v1761 = vadd.f32 %v1747, %v1753
      %v1762 = vadd.f32 %v1748, %v1753
      %v1763 = vpack.c.bf16 %v1756, %v1755
      %v1764 = vpack.c.bf16 %v1758, %v1757
      %v1765 = vpack.c.bf16 %v1760, %v1759
      %v1766 = vpack.c.bf16 %v1762, %v1761
      %v1767 = vld [vmem:[%s13] sm:$0xf]
      %v1768 = vld [vmem:[%s13 + $0x4] sm:$0xf]
      %v1769 = vld [vmem:[%s13 + $0x8] sm:$0xf]
      %v1770 = vld [vmem:[%s13 + $0xc] sm:$0xf]
      %v1771 = vld [vmem:[%s14] sm:$0x1]
      %v1773 = vlaneseq
      %v1774 = vshrl.u32 %v1773, 7
      %v1775 = vsub.s32 0, %v1774
      %v1776 = vrot.slane %v1771, %v1775
      %v1782 = vunpack.c.l.b16 %v1767
      %v1783 = vunpack.c.l.b16 %v1768
      %v1784 = vunpack.c.l.b16 %v1769
      %v1785 = vunpack.c.l.b16 %v1770
      %v1786 = vpack.c.b16 %v1783, %v1782
      %v1787 = vpack.c.b16 %v1785, %v1784
      %v1791 = vsel %vm560, %v1763, 0
      %v1794 = vsel %vm560, %v1764, 0
      %v1797 = vsel %vm560, %v1765, 0
      %v1800 = vsel %vm560, %v1766, 0
      %1802 = vmatprep.subr.bf16.mxu0 0
      %1803 = vmatpush1.bf16.msra.mxu0 0
      %1804 = vmatprep.subr.bf16.mxu0 0
      %1805 = vmatpush1.bf16.msra.mxu0 0
      %1806 = vmatprep.subr.bf16.mxu0 0
      %1807 = vmatpush1.bf16.msra.mxu0 0
      %1808 = vmatprep.subr.bf16.mxu0 0
      %1809 = vmatpush1.bf16.msra.mxu0 0
      %1810 = vmatprep.subr.bf16.mxu0 0
      %1811 = vmatpush1.bf16.msra.mxu0 0
      %1812 = vmatprep.subr.bf16.mxu0 0
      %1813 = vmatpush1.bf16.msra.mxu0 0
      %1814 = vmatprep.subr.bf16.mxu0 0
      %1815 = vmatpush1.bf16.msra.mxu0 %v1787
      %1816 = vmatprep.subr.bf16.mxu0 0
      %1817 = vmatpush1.bf16.msra.mxu0 %v1786
      %1818 = vmatprep.subr.bf16.mxu0 0
      %1819 = vmatpush2.bf16.msra.mxu0 0
      %1820 = vmatprep.subr.bf16.mxu0 0
      %1821 = vmatpush2.bf16.msra.mxu0 0
      %1822 = vmatprep.subr.bf16.mxu0 0
      %1823 = vmatpush2.bf16.msra.mxu0 0
      %1824 = vmatprep.subr.bf16.mxu0 0
      %1825 = vmatpush2.bf16.msra.mxu0 0
      %1826 = vmatprep.subr.bf16.mxu0 0
      %1827 = vmatpush2.bf16.msra.mxu0 0
      %1828 = vmatprep.subr.bf16.mxu0 0
      %1829 = vmatpush2.bf16.msra.mxu0 0
      %1830 = vmatprep.subr.bf16.mxu0 0
      %1831 = vmatpush2.bf16.msra.mxu0 0
      %1832 = vmatprep.subr.bf16.mxu0 0
      %1833 = vmatpush2.bf16.msra.mxu0 0
      %1834 = vmatprep.mubr.bf16.mxu0 0
      %1835 = vmatmul.mubr.bf16.gmra.mxu0 %v1791
      %v1836 = vpop.f32.mrf.mxu0
      %v1837 = vadd.f32 %v1776, %v1836
      %v1838 = vpop.f32.mrf.mxu0
      %v1839 = vpop.f32.mrf.mxu0
      %v1840 = vadd.f32 %v1776, %v1839
      %v1841 = vpop.f32.mrf.mxu0
      %1842 = vmatprep.mubr.bf16.mxu0 0
      %1843 = vmatmul.mubr.bf16.gmra.mxu0 %v1794
      %v1844 = vpop.f32.mrf.mxu0
      %v1845 = vadd.f32 %v1776, %v1844
      %v1846 = vpop.f32.mrf.mxu0
      %v1847 = vpop.f32.mrf.mxu0
      %v1848 = vadd.f32 %v1776, %v1847
      %v1849 = vpop.f32.mrf.mxu0
      %1850 = vmatprep.mubr.bf16.mxu0 0
      %1851 = vmatmul.mubr.bf16.gmra.mxu0 %v1797
      %v1852 = vpop.f32.mrf.mxu0
      %v1853 = vadd.f32 %v1776, %v1852
      %v1854 = vpop.f32.mrf.mxu0
      %v1855 = vpop.f32.mrf.mxu0
      %v1856 = vadd.f32 %v1776, %v1855
      %v1857 = vpop.f32.mrf.mxu0
      %1858 = vmatprep.mubr.bf16.mxu0 0
      %1859 = vmatmul.mubr.bf16.gmra.mxu0 %v1800
      %v1860 = vpop.f32.mrf.mxu0
      %v1861 = vadd.f32 %v1776, %v1860
      %v1862 = vpop.f32.mrf.mxu0
      %v1863 = vpop.f32.mrf.mxu0
      %v1864 = vadd.f32 %v1776, %v1863
      %v1865 = vpop.f32.mrf.mxu0
      %1866 = vdwg.mxu0
      %v1867 = vmul.f32 %v1837, 0.5
      %v1868 = vmul.f32 %v1840, 0.5
      %v1869 = vmul.f32 %v1845, 0.5
      %v1870 = vmul.f32 %v1848, 0.5
      %v1871 = vmul.f32 %v1853, 0.5
      %v1872 = vmul.f32 %v1856, 0.5
      %v1873 = vmul.f32 %v1861, 0.5
      %v1874 = vmul.f32 %v1864, 0.5
      %v1875 = vmul.f32 %v1837, 0.044715
      %v1876 = vmul.f32 %v1840, 0.044715
      %v1877 = vmul.f32 %v1845, 0.044715
      %v1878 = vmul.f32 %v1848, 0.044715
      %v1879 = vmul.f32 %v1853, 0.044715
      %v1880 = vmul.f32 %v1856, 0.044715
      %v1881 = vmul.f32 %v1861, 0.044715
      %v1882 = vmul.f32 %v1864, 0.044715
      %v1883 = vmul.f32 %v1875, %v1837
      %v1884 = vmul.f32 %v1876, %v1840
      %v1885 = vmul.f32 %v1877, %v1845
      %v1886 = vmul.f32 %v1878, %v1848
      %v1887 = vmul.f32 %v1879, %v1853
      %v1888 = vmul.f32 %v1880, %v1856
      %v1889 = vmul.f32 %v1881, %v1861
      %v1890 = vmul.f32 %v1882, %v1864
      %v1891 = vmul.f32 %v1883, %v1837
      %v1892 = vmul.f32 %v1884, %v1840
      %v1893 = vmul.f32 %v1885, %v1845
      %v1894 = vmul.f32 %v1886, %v1848
      %v1895 = vmul.f32 %v1887, %v1853
      %v1896 = vmul.f32 %v1888, %v1856
      %v1897 = vmul.f32 %v1889, %v1861
      %v1898 = vmul.f32 %v1890, %v1864
      %v1899 = vadd.f32 %v1837, %v1891
      %v1900 = vadd.f32 %v1840, %v1892
      %v1901 = vadd.f32 %v1845, %v1893
      %v1902 = vadd.f32 %v1848, %v1894
      %v1903 = vadd.f32 %v1853, %v1895
      %v1904 = vadd.f32 %v1856, %v1896
      %v1905 = vadd.f32 %v1861, %v1897
      %v1906 = vadd.f32 %v1864, %v1898
      %v1907 = vmul.f32 %v1899, 0.7978846
      %v1908 = vmul.f32 %v1900, 0.7978846
      %v1909 = vmul.f32 %v1901, 0.7978846
      %v1910 = vmul.f32 %v1902, 0.7978846
      %v1911 = vmul.f32 %v1903, 0.7978846
      %v1912 = vmul.f32 %v1904, 0.7978846
      %v1913 = vmul.f32 %v1905, 0.7978846
      %v1914 = vmul.f32 %v1906, 0.7978846
      %v1915 = vtanh.pop %v1907
      %v1916 = vtanh.pop %v1908
      %v1917 = vtanh.pop %v1909
      %v1918 = vtanh.pop %v1910
      %v1919 = vtanh.pop %v1911
      %v1920 = vtanh.pop %v1912
      %v1921 = vtanh.pop %v1913
      %v1922 = vtanh.pop %v1914
      %v1923 = vadd.f32 %v1915, 1.0
      %v1924 = vadd.f32 %v1916, 1.0
      %v1925 = vadd.f32 %v1917, 1.0
      %v1926 = vadd.f32 %v1918, 1.0
      %v1927 = vadd.f32 %v1919, 1.0
      %v1928 = vadd.f32 %v1920, 1.0
      %v1929 = vadd.f32 %v1921, 1.0
      %v1930 = vadd.f32 %v1922, 1.0
      %v1931 = vmul.f32 %v1867, %v1923
      %v1932 = vmul.f32 %v1868, %v1924
      %v1933 = vmul.f32 %v1869, %v1925
      %v1934 = vmul.f32 %v1870, %v1926
      %v1935 = vmul.f32 %v1871, %v1927
      %v1936 = vmul.f32 %v1872, %v1928
      %v1937 = vmul.f32 %v1873, %v1929
      %v1938 = vmul.f32 %v1874, %v1930
      %v1939 = vpack.c.bf16 %v1932, %v1931
      %v1940 = vpack.c.bf16 %v1934, %v1933
      %v1941 = vpack.c.bf16 %v1936, %v1935
      %v1942 = vpack.c.bf16 %v1938, %v1937
      %v1943 = vld [vmem:[%s15] sm:$0xf]
      %v1944 = vld [vmem:[%s15 + $0x4] sm:$0xf]
      %v1945 = vld [vmem:[%s15 + $0x8] sm:$0xf]
      %v1946 = vld [vmem:[%s15 + $0xc] sm:$0xf]
      %v1947 = vld [vmem:[%s15 + $0x10] sm:$0xf]
      %v1948 = vld [vmem:[%s15 + $0x14] sm:$0xf]
      %v1949 = vld [vmem:[%s15 + $0x18] sm:$0xf]
      %v1950 = vld [vmem:[%s15 + $0x1c] sm:$0xf]
      %v1951 = vld [vmem:[%s15 + $0x20] sm:$0xf]
      %v1952 = vld [vmem:[%s15 + $0x24] sm:$0xf]
      %v1953 = vld [vmem:[%s15 + $0x28] sm:$0xf]
      %v1954 = vld [vmem:[%s15 + $0x2c] sm:$0xf]
      %v1955 = vld [vmem:[%s16] sm:$0x1]
      %v1957 = vlaneseq
      %v1958 = vshrl.u32 %v1957, 7
      %v1959 = vsub.s32 0, %v1958
      %v1960 = vrot.slane %v1955, %v1959
      %v1974 = vunpack.c.l.b16 %v1943
      %v1975 = vunpack.c.l.b16 %v1944
      %v1976 = vunpack.c.l.b16 %v1945
      %v1977 = vunpack.c.l.b16 %v1946
      %v1978 = vunpack.c.l.b16 %v1947
      %v1979 = vunpack.c.l.b16 %v1948
      %v1980 = vunpack.c.l.b16 %v1949
      %v1981 = vunpack.c.l.b16 %v1950
      %v1982 = vunpack.c.l.b16 %v1951
      %v1983 = vunpack.c.l.b16 %v1952
      %v1984 = vunpack.c.l.b16 %v1953
      %v1985 = vunpack.c.l.b16 %v1954
      %v1986 = vpack.c.b16 %v1975, %v1974
      %v1987 = vpack.c.b16 %v1977, %v1976
      %v1988 = vpack.c.b16 %v1979, %v1978
      %v1989 = vpack.c.b16 %v1981, %v1980
      %v1990 = vpack.c.b16 %v1983, %v1982
      %v1991 = vpack.c.b16 %v1985, %v1984
      %vm1998 = vcmask 785408
      %v2000 = vsel %vm1998, %v1939, 0
      %v2003 = vsel %vm1998, %v1940, 0
      %v2006 = vsel %vm1998, %v1941, 0
      %v2009 = vsel %vm1998, %v1942, 0
      %2011 = vmatprep.subr.bf16.mxu0 0
      %2012 = vmatpush1.bf16.msra.mxu0 0
      %2013 = vmatprep.subr.bf16.mxu0 0
      %2014 = vmatpush1.bf16.msra.mxu0 0
      %2015 = vmatprep.subr.bf16.mxu0 0
      %2016 = vmatpush1.bf16.msra.mxu0 %v1991
      %2017 = vmatprep.subr.bf16.mxu0 0
      %2018 = vmatpush1.bf16.msra.mxu0 %v1990
      %2019 = vmatprep.subr.bf16.mxu0 0
      %2020 = vmatpush1.bf16.msra.mxu0 %v1989
      %2021 = vmatprep.subr.bf16.mxu0 0
      %2022 = vmatpush1.bf16.msra.mxu0 %v1988
      %2023 = vmatprep.subr.bf16.mxu0 0
      %2024 = vmatpush1.bf16.msra.mxu0 %v1987
      %2025 = vmatprep.subr.bf16.mxu0 0
      %2026 = vmatpush1.bf16.msra.mxu0 %v1986
      %2027 = vmatprep.subr.bf16.mxu0 0
      %2028 = vmatpush2.bf16.msra.mxu0 0
      %2029 = vmatprep.subr.bf16.mxu0 0
      %2030 = vmatpush2.bf16.msra.mxu0 0
      %2031 = vmatprep.subr.bf16.mxu0 0
      %2032 = vmatpush2.bf16.msra.mxu0 0
      %2033 = vmatprep.subr.bf16.mxu0 0
      %2034 = vmatpush2.bf16.msra.mxu0 0
      %2035 = vmatprep.subr.bf16.mxu0 0
      %2036 = vmatpush2.bf16.msra.mxu0 0
      %2037 = vmatprep.subr.bf16.mxu0 0
      %2038 = vmatpush2.bf16.msra.mxu0 0
      %2039 = vmatprep.subr.bf16.mxu0 0
      %2040 = vmatpush2.bf16.msra.mxu0 0
      %2041 = vmatprep.subr.bf16.mxu0 0
      %2042 = vmatpush2.bf16.msra.mxu0 0
      %2043 = vmatprep.mubr.bf16.mxu0 0
      %2044 = vmatmul.mubr.bf16.gmra.mxu0 %v2000
      %v2045 = vpop.f32.mrf.mxu0
      %v2046 = vadd.f32 %v1960, %v2045
      %v2047 = vpop.f32.mrf.mxu0
      %v2048 = vpop.f32.mrf.mxu0
      %v2049 = vadd.f32 %v1960, %v2048
      %v2050 = vpop.f32.mrf.mxu0
      %2051 = vmatprep.mubr.bf16.mxu0 0
      %2052 = vmatmul.mubr.bf16.gmra.mxu0 %v2003
      %v2053 = vpop.f32.mrf.mxu0
      %v2054 = vadd.f32 %v1960, %v2053
      %v2055 = vpop.f32.mrf.mxu0
      %v2056 = vpop.f32.mrf.mxu0
      %v2057 = vadd.f32 %v1960, %v2056
      %v2058 = vpop.f32.mrf.mxu0
      %2059 = vmatprep.mubr.bf16.mxu0 0
      %2060 = vmatmul.mubr.bf16.gmra.mxu0 %v2006
      %v2061 = vpop.f32.mrf.mxu0
      %v2062 = vadd.f32 %v1960, %v2061
      %v2063 = vpop.f32.mrf.mxu0
      %v2064 = vpop.f32.mrf.mxu0
      %v2065 = vadd.f32 %v1960, %v2064
      %v2066 = vpop.f32.mrf.mxu0
      %2067 = vmatprep.mubr.bf16.mxu0 0
      %2068 = vmatmul.mubr.bf16.gmra.mxu0 %v2009
      %v2069 = vpop.f32.mrf.mxu0
      %v2070 = vadd.f32 %v1960, %v2069
      %v2071 = vpop.f32.mrf.mxu0
      %v2072 = vpop.f32.mrf.mxu0
      %v2073 = vadd.f32 %v1960, %v2072
      %v2074 = vpop.f32.mrf.mxu0
      %2075 = vdwg.mxu0
      %v2076 = vld [vmem:[%s10] sm:$0x1]
      %v2078 = vlaneseq
      %v2079 = vshrl.u32 %v2078, 7
      %v2080 = vsub.s32 0, %v2079
      %v2081 = vrot.slane %v2076, %v2080
      %v2083 = vmul.f32 %v2081, %v2046
      %v2084 = vmul.f32 %v2081, %v2049
      %v2085 = vmul.f32 %v2081, %v2054
      %v2086 = vmul.f32 %v2081, %v2057
      %v2087 = vmul.f32 %v2081, %v2062
      %v2088 = vmul.f32 %v2081, %v2065
      %v2089 = vmul.f32 %v2081, %v2070
      %v2090 = vmul.f32 %v2081, %v2073
      %v2091 = vadd.f32 %v1621, %v2083
      %v2092 = vadd.f32 %v1622, %v2084
      %v2093 = vadd.f32 %v1623, %v2085
      %v2094 = vadd.f32 %v1624, %v2086
      %v2095 = vadd.f32 %v1625, %v2087
      %v2096 = vadd.f32 %v1626, %v2088
      %v2097 = vadd.f32 %v1627, %v2089
      %v2098 = vadd.f32 %v1628, %v2090
      %2099 = vst.msk [vmem:[%s548] sm:$0xff] %vm560, %v2091
      %2100 = vst.msk [vmem:[%s548 + $0x8] sm:$0xff] %vm560, %v2092
      %2101 = vst.msk [vmem:[%s548 + $0x10] sm:$0xff] %vm560, %v2093
      %2102 = vst.msk [vmem:[%s548 + $0x18] sm:$0xff] %vm560, %v2094
      %2103 = vst.msk [vmem:[%s548 + $0x20] sm:$0xff] %vm560, %v2095
      %2104 = vst.msk [vmem:[%s548 + $0x28] sm:$0xff] %vm560, %v2096
      %2105 = vst.msk [vmem:[%s548 + $0x30] sm:$0xff] %vm560, %v2097
      %2106 = vst.msk [vmem:[%s548 + $0x38] sm:$0xff] %vm560, %v2098
      %p2107 = scmp.lt.s32.totalorder %s28, 1
      %s2108 = scalar_select %p2107, %s28, 1
      %s2109 = smul.addr %s2108, 8
      %s2110 = smul.addr %s2109, 8
      %s2111 = scalar_lea.vmem %s17, %s2110
      // Predicated region
      $region89: #{tpu_custom_call.1} parent=87 // pred_check
        %p2112 = pneg %p408
      $region90: #{tpu_custom_call.1} parent=87 // pred_check_branch
        %2114 = sbr.rel (%p2112) target = $region92
      $region91: #{tpu_custom_call.1} parent=87 // pred_region
        _
      $region92: #{tpu_custom_call.1} parent=87 // pred_fallthru
        _
    $region88: #{tpu_custom_call.1} parent=5 // pred_fallthru
      _
    %p2115 = scmp.le.s32.totalorder 2, %s23
    // Predicated region
    $region93: #{tpu_custom_call.1} parent=5 // pred_check
      %p2116 = pneg %p2115
    $region94: #{tpu_custom_call.1} parent=5 // pred_check_branch
      %2118 = sbr.rel (%p2116) target = $region96
    $region95: #{tpu_custom_call.1} parent=5 // pred_region
      %s2119 = ssub.s32 %s23, 2
      // Predicated region
      $region97: #{tpu_custom_call.1} parent=95 // pred_check
        %p2120 = pneg %p414
      $region98: #{tpu_custom_call.1} parent=95 // pred_check_branch
        %2122 = sbr.rel (%p2120) target = $region100
      $region99: #{tpu_custom_call.1} parent=95 // pred_region
        %p2123 = scmp.lt.s32.totalorder %s29, 1
        %s2124 = scalar_select %p2123, %s29, 1
        %s2125 = smul.addr %s2124, 8
        %s2126 = smul.addr %s2125, 8
        %s2127 = scalar_lea.vmem %s17, %s2126
      $region100: #{tpu_custom_call.1} parent=95 // pred_fallthru
        _
    $region96: #{tpu_custom_call.1} parent=5 // pred_fallthru
      _
  $region6: #{tpu_custom_call.1} parent=0 // loop_footer
    %s27 = sadd.s32 1, %s23
  $region7: #{tpu_custom_call.1} parent=0 // loop_footer_branch
    %22 = sbr.rel target = $region3
  $region8: #{tpu_custom_call.1} parent=0 // loop_exit
    _

</llo_original>
